<compile_context>
chip_gen: v5e
topology: v5e:2x2
jax: 0.10.0
libtpu: 0.0.40
codegen_flags: <defaults>
</compile_context>

<pallas_src>
import math

import jax
import jax.numpy as jnp
from jax.experimental import pallas as pl
from jax.experimental.pallas import tpu as pltpu

# Module hyper-params (embed_size=32, heads=4, forward_expansion=4, dropout inert)
EMBED = 32
HEADS = 4
HEAD_DIM = EMBED // HEADS
FFN = 4 * EMBED
SEQ = 8
BATCH = 2
EPS = 1e-5  # nn.LayerNorm default


def _layernorm(x, gamma, beta):
    mu = jnp.mean(x, axis=-1, keepdims=True)
    var = jnp.mean((x - mu) * (x - mu), axis=-1, keepdims=True)
    return (x - mu) * jax.lax.rsqrt(var + EPS) * gamma + beta


def transformer_block_kernel(vh_ref, kh_ref, qh_ref, q_ref, bias_ref,
                             wqkv_ref, woh_ref, w1_ref, w2_ref, vec_ref,
                             out_ref):
    NH, S, d = vh_ref.shape          # (batch*heads, seq, head_dim)
    N, _, E = q_ref.shape            # (batch, seq, embed)
    H = NH // N
    NS = N * S
    F = w1_ref.shape[1]

    # --- Q/K/V projections: one flattened (NH*S, d) @ (d, d) matmul each -------------
    def proj(x_ref, w):
        x2 = x_ref[...].reshape(NH * S, d)
        return jnp.dot(x2, w, preferred_element_type=jnp.float32).reshape(NH, S, d)

    Vh = proj(vh_ref, wqkv_ref[0])
    Kh = proj(kh_ref, wqkv_ref[1])
    Qh = proj(qh_ref, wqkv_ref[2])

    # --- scaled, masked softmax attention, batched over batch*heads ------------------
    inv_scale = jnp.float32(1.0 / math.sqrt(E))
    scores = jnp.einsum("bqd,bkd->bqk", Qh, Kh,
                        preferred_element_type=jnp.float32) * inv_scale
    scores = scores + bias_ref[...]                      # additive mask bias (0 / -1e20)
    m = jnp.max(scores, axis=-1, keepdims=True)
    p = jnp.exp(scores - m)
    attn = p * pl.reciprocal(jnp.sum(p, axis=-1, keepdims=True), approx=True)
    heads = jnp.einsum("bqk,bkd->bqd", attn, Vh,
                       preferred_element_type=jnp.float32)          # (NH, S, d)

    # --- fc_out folded per head: concat(heads) @ Wo == sum_h head_h @ Wo[h*d:(h+1)*d,:]
    po = jnp.einsum("bsd,bde->bse", heads, woh_ref[...],
                    preferred_element_type=jnp.float32)             # (NH, S, E)
    po4 = po.reshape(N, H, S, E)
    attn_out = po4[:, 0]
    for h in range(1, H):            # H-1 elementwise tile adds (no matmuls / selects)
        attn_out = attn_out + po4[:, h]
    attn_out = attn_out.reshape(NS, E)

    # --- packed parameter vectors: rows = [bo, g1, be1, b1, b2, g2, be2] -------------
    bo = vec_ref[0:1, :E]
    g1 = vec_ref[1:2, :E]
    be1 = vec_ref[2:3, :E]
    b1 = vec_ref[3:4, :F]
    b2 = vec_ref[4:5, :E]
    g2 = vec_ref[5:6, :E]
    be2 = vec_ref[6:7, :E]

    # dropout == identity (eval mode)
    x = _layernorm(attn_out + bo + q_ref[...].reshape(NS, E), g1, be1)      # (NS, E)

    h1 = jnp.maximum(
        jnp.dot(x, w1_ref[...], preferred_element_type=jnp.float32) + b1, 0.0)
    ff = jnp.dot(h1, w2_ref[...], preferred_element_type=jnp.float32) + b2

    out_ref[...] = _layernorm(ff + x, g2, be2).astype(out_ref.dtype)


def transformer_block(value, key, query, mask, params):
    wv, wk, wq, wo, bo, g1, be1, w1, b1, w2, b2, g2, be2 = params
    N, S, E = query.shape
    H = HEADS
    d = E // H
    NH, NS = N * H, N * S
    F = w1.shape[1]
    assert E <= 128 and F <= 128

    # ---- wrapper-side (plain XLA) layout prep: free relative to the kernel ----------
    def split_heads(x):                       # (N, S, E) -> (N*H, S, d)
        return x.reshape(N, S, H, d).transpose(0, 2, 1, 3).reshape(NH, S, d)

    vh, kh, qh = split_heads(value), split_heads(key), split_heads(query)

    # additive mask bias, already broadcast over heads (torch: masked_fill(mask==0, -1e20))
    bias = jnp.where(mask == 0.0, jnp.float32(-1e20), jnp.float32(0.0))     # (N, S, S)
    bias = jnp.broadcast_to(bias[:, None], (N, H, S, S)).reshape(NH, S, S)

    wqkv = jnp.stack([wv, wk, wq])                                          # (3, d, d)
    woh = jnp.tile(wo.reshape(H, d, E), (N, 1, 1))                          # (NH, d, E)

    vecs = jnp.zeros((8, 128), jnp.float32)
    vecs = vecs.at[0, :E].set(bo).at[1, :E].set(g1).at[2, :E].set(be1)
    vecs = vecs.at[3, :F].set(b1).at[4, :E].set(b2)
    vecs = vecs.at[5, :E].set(g2).at[6, :E].set(be2)

    inputs = [vh, kh, qh, query, bias, wqkv, woh, w1, w2, vecs]

    def full_spec(a):
        return pl.BlockSpec(a.shape, lambda i, _nd=a.ndim: (0,) * _nd)

    out2d = pl.pallas_call(
        transformer_block_kernel,
        out_shape=jax.ShapeDtypeStruct((NS, E), jnp.float32),
        grid_spec=pltpu.PrefetchScalarGridSpec(
            num_scalar_prefetch=0,
            grid=(1,),                       # whole batch fused into one grid step
            in_specs=[full_spec(a) for a in inputs],
            out_specs=pl.BlockSpec((NS, E), lambda i: (0, 0)),
        ),
        compiler_params=pltpu.CompilerParams(
            dimension_semantics=("arbitrary",)),
    )(*inputs)
    return out2d.reshape(N, S, E)


def _reference(value, key, query, mask, params):
    """Pure-JAX reference mirroring the PyTorch module (eval mode)."""
    wv, wk, wq, wo, bo, g1, be1, w1, b1, w2, b2, g2, be2 = params
    N, S, E = query.shape
    H, d = HEADS, E // HEADS

    def split(x):
        return x.reshape(N, S, H, d)

    with jax.default_matmul_precision("highest"):
        v = split(value) @ wv
        k = split(key) @ wk
        q = split(query) @ wq
        energy = jnp.einsum("nqhd,nkhd->nhqk", q, k)
        energy = jnp.where(mask[:, None] == 0.0, jnp.float32(-1e20), energy)
        attn = jax.nn.softmax(energy / math.sqrt(E), axis=-1)
        ctx = jnp.einsum("nhqk,nkhd->nqhd", attn, v).reshape(N, S, E)
        att_out = ctx @ wo + bo

        def ln(x, g, b):
            mu = x.mean(-1, keepdims=True)
            var = ((x - mu) ** 2).mean(-1, keepdims=True)
            return (x - mu) / jnp.sqrt(var + EPS) * g + b

        x = ln(att_out + query, g1, be1)
        h1 = jax.nn.relu(x @ w1 + b1)
        ff = h1 @ w2 + b2
        return ln(ff + x, g2, be2)


if __name__ == "__main__":
    root = jax.random.PRNGKey(0)
    keys = jax.random.split(root, 16)

    def nrm(k, shape, scale=0.05):
        return scale * jax.random.normal(k, shape, dtype=jnp.float32)

    # SelfAttention params (Linear(head_dim, head_dim, bias=False) shared across heads;
    # weights stored pre-transposed so that x @ W == nn.Linear(x)).
    wv = nrm(keys[0], (HEAD_DIM, HEAD_DIM))
    wk = nrm(keys[1], (HEAD_DIM, HEAD_DIM))
    wq = nrm(keys[2], (HEAD_DIM, HEAD_DIM))
    wo = nrm(keys[3], (EMBED, EMBED))
    bo = nrm(keys[4], (EMBED,))
    # LayerNorm 1 / 2
    g1 = 1.0 + nrm(keys[5], (EMBED,))
    be1 = nrm(keys[6], (EMBED,))
    g2 = 1.0 + nrm(keys[11], (EMBED,))
    be2 = nrm(keys[12], (EMBED,))
    # Feed-forward
    w1 = nrm(keys[7], (EMBED, FFN))
    b1 = nrm(keys[8], (FFN,))
    w2 = nrm(keys[9], (FFN, EMBED))
    b2 = nrm(keys[10], (EMBED,))

    params = [wv, wk, wq, wo, bo, g1, be1, w1, b1, w2, b2, g2, be2]

    value = jax.random.normal(keys[13], (BATCH, SEQ, EMBED), dtype=jnp.float32)
    key_in = jax.random.normal(keys[14], (BATCH, SEQ, EMBED), dtype=jnp.float32)
    query = jax.random.normal(keys[15], (BATCH, SEQ, EMBED), dtype=jnp.float32)
    # causal mask, 1.0 = attend (broadcast over heads like torch's masked_fill)
    mask = jnp.tile(jnp.tril(jnp.ones((SEQ, SEQ), jnp.float32))[None], (BATCH, 1, 1))

    # TODO(synk): nn.Dropout is stochastic in train mode; implemented here as identity (eval).
    out = transformer_block(value, key_in, query, mask, params)
    jax.block_until_ready(out)
    assert out.shape == (BATCH, SEQ, EMBED)
    assert bool(jnp.all(jnp.isfinite(out)))

    ref = _reference(value, key_in, query, mask, params)
    max_err = float(jnp.max(jnp.abs(out - ref)))
    assert max_err < 1e-2, f"max abs error vs reference: {max_err}"
    print("KERNEL_OK")
</pallas_src>

<mosaic_0001>
module attributes {stable_mosaic.version = 11 : i64} {
  func.func @transformer_block_kernel(%arg0: i32, %arg1: memref<8x8x8xf32, #tpu.memory_space<vmem>>, %arg2: memref<8x8x8xf32, #tpu.memory_space<vmem>>, %arg3: memref<8x8x8xf32, #tpu.memory_space<vmem>>, %arg4: memref<2x8x32xf32, #tpu.memory_space<vmem>>, %arg5: memref<8x8x8xf32, #tpu.memory_space<vmem>>, %arg6: memref<3x8x8xf32, #tpu.memory_space<vmem>>, %arg7: memref<8x8x32xf32, #tpu.memory_space<vmem>>, %arg8: memref<32x128xf32, #tpu.memory_space<vmem>>, %arg9: memref<128x32xf32, #tpu.memory_space<vmem>>, %arg10: memref<8x128xf32, #tpu.memory_space<vmem>>, %arg11: memref<16x32xf32, #tpu.memory_space<vmem>>) attributes {dimension_semantics = [#tpu.dimension_semantics<arbitrary>], iteration_bounds = array<i64: 1>, scalar_prefetch = 0 : i64, scratch_operands = 0 : i64, tpu.core_type = #tpu.core_type<tc>, window_params = [{pipeline_mode = #tpu.pipeline_mode<synchronous>, transform_indices = @transform_0, window_bounds = array<i64: 8, 8, 8>}, {pipeline_mode = #tpu.pipeline_mode<synchronous>, transform_indices = @transform_1, window_bounds = array<i64: 8, 8, 8>}, {pipeline_mode = #tpu.pipeline_mode<synchronous>, transform_indices = @transform_2, window_bounds = array<i64: 8, 8, 8>}, {pipeline_mode = #tpu.pipeline_mode<synchronous>, transform_indices = @transform_3, window_bounds = array<i64: 2, 8, 32>}, {pipeline_mode = #tpu.pipeline_mode<synchronous>, transform_indices = @transform_4, window_bounds = array<i64: 8, 8, 8>}, {pipeline_mode = #tpu.pipeline_mode<synchronous>, transform_indices = @transform_5, window_bounds = array<i64: 3, 8, 8>}, {pipeline_mode = #tpu.pipeline_mode<synchronous>, transform_indices = @transform_6, window_bounds = array<i64: 8, 8, 32>}, {pipeline_mode = #tpu.pipeline_mode<synchronous>, transform_indices = @transform_7, window_bounds = array<i64: 32, 128>}, {pipeline_mode = #tpu.pipeline_mode<synchronous>, transform_indices = @transform_8, window_bounds = array<i64: 128, 32>}, {pipeline_mode = #tpu.pipeline_mode<synchronous>, transform_indices = @transform_9, window_bounds = array<i64: 8, 128>}, {pipeline_mode = #tpu.pipeline_mode<synchronous>, transform_indices = @transform_10, window_bounds = array<i64: 16, 32>}]} {
    %c0 = arith.constant 0 : index
    %c0_0 = arith.constant 0 : index
    %c0_1 = arith.constant 0 : index
    %0 = vector.load %arg6[%c0, %c0_0, %c0_1] : memref<3x8x8xf32, #tpu.memory_space<vmem>>, vector<1x8x8xf32>
    %1 = vector.shape_cast %0 : vector<1x8x8xf32> to vector<8x8xf32>
    %c0_2 = arith.constant 0 : index
    %c0_3 = arith.constant 0 : index
    %c0_4 = arith.constant 0 : index
    %2 = vector.load %arg1[%c0_2, %c0_3, %c0_4] : memref<8x8x8xf32, #tpu.memory_space<vmem>>, vector<8x8x8xf32>
    %3 = vector.shape_cast %2 : vector<8x8x8xf32> to vector<64x8xf32>
    %cst = arith.constant dense<0.000000e+00> : vector<64x8xf32>
    %4 = tpu.matmul %3, %1, %cst {dimension_numbers = #tpu.dot_dimension_numbers<[1], [0], [0], [1], [0, 0, 1, 1], [], []>} : vector<64x8xf32>, vector<8x8xf32>, vector<64x8xf32> -> vector<64x8xf32>
    %5 = vector.shape_cast %4 : vector<64x8xf32> to vector<8x8x8xf32>
    %c1 = arith.constant 1 : index
    %c0_5 = arith.constant 0 : index
    %c0_6 = arith.constant 0 : index
    %6 = vector.load %arg6[%c1, %c0_5, %c0_6] : memref<3x8x8xf32, #tpu.memory_space<vmem>>, vector<1x8x8xf32>
    %7 = vector.shape_cast %6 : vector<1x8x8xf32> to vector<8x8xf32>
    %c0_7 = arith.constant 0 : index
    %c0_8 = arith.constant 0 : index
    %c0_9 = arith.constant 0 : index
    %8 = vector.load %arg2[%c0_7, %c0_8, %c0_9] : memref<8x8x8xf32, #tpu.memory_space<vmem>>, vector<8x8x8xf32>
    %9 = vector.shape_cast %8 : vector<8x8x8xf32> to vector<64x8xf32>
    %cst_10 = arith.constant dense<0.000000e+00> : vector<64x8xf32>
    %10 = tpu.matmul %9, %7, %cst_10 {dimension_numbers = #tpu.dot_dimension_numbers<[1], [0], [0], [1], [0, 0, 1, 1], [], []>} : vector<64x8xf32>, vector<8x8xf32>, vector<64x8xf32> -> vector<64x8xf32>
    %11 = vector.shape_cast %10 : vector<64x8xf32> to vector<8x8x8xf32>
    %c2 = arith.constant 2 : index
    %c0_11 = arith.constant 0 : index
    %c0_12 = arith.constant 0 : index
    %12 = vector.load %arg6[%c2, %c0_11, %c0_12] : memref<3x8x8xf32, #tpu.memory_space<vmem>>, vector<1x8x8xf32>
    %13 = vector.shape_cast %12 : vector<1x8x8xf32> to vector<8x8xf32>
    %c0_13 = arith.constant 0 : index
    %c0_14 = arith.constant 0 : index
    %c0_15 = arith.constant 0 : index
    %14 = vector.load %arg3[%c0_13, %c0_14, %c0_15] : memref<8x8x8xf32, #tpu.memory_space<vmem>>, vector<8x8x8xf32>
    %15 = vector.shape_cast %14 : vector<8x8x8xf32> to vector<64x8xf32>
    %cst_16 = arith.constant dense<0.000000e+00> : vector<64x8xf32>
    %16 = tpu.matmul %15, %13, %cst_16 {dimension_numbers = #tpu.dot_dimension_numbers<[1], [0], [0], [1], [0, 0, 1, 1], [], []>} : vector<64x8xf32>, vector<8x8xf32>, vector<64x8xf32> -> vector<64x8xf32>
    %17 = vector.shape_cast %16 : vector<64x8xf32> to vector<8x8x8xf32>
    "tpu.trace_start"() <{level = 10 : i32, message = "bqd,bkd->bqk"}> : () -> ()
    %cst_17 = arith.constant dense<0.000000e+00> : vector<8x8x8xf32>
    %18 = tpu.matmul %17, %11, %cst_17 {dimension_numbers = #tpu.dot_dimension_numbers<[2], [2], [1], [1], [0, 0, 0, 1, 1, 1], [0], [0]>} : vector<8x8x8xf32>, vector<8x8x8xf32>, vector<8x8x8xf32> -> vector<8x8x8xf32>
    "tpu.trace_stop"() : () -> ()
    %cst_18 = arith.constant 0.176776692 : f32
    %19 = vector.broadcast %cst_18 : f32 to vector<8x8x8xf32>
    %20 = arith.mulf %18, %19 : vector<8x8x8xf32>
    %c0_19 = arith.constant 0 : index
    %c0_20 = arith.constant 0 : index
    %c0_21 = arith.constant 0 : index
    %21 = vector.load %arg5[%c0_19, %c0_20, %c0_21] : memref<8x8x8xf32, #tpu.memory_space<vmem>>, vector<8x8x8xf32>
    %22 = arith.addf %20, %21 : vector<8x8x8xf32>
    %cst_22 = arith.constant dense<0xFF800000> : vector<8x8xf32>
    %23 = vector.multi_reduction <maximumf>, %22, %cst_22 [2] : vector<8x8x8xf32> to vector<8x8xf32>
    %24 = vector.shape_cast %23 : vector<8x8xf32> to vector<8x8x1xf32>
    %25 = vector.broadcast %24 : vector<8x8x1xf32> to vector<8x8x8xf32>
    %26 = arith.subf %22, %25 : vector<8x8x8xf32>
    %27 = math.exp %26 : vector<8x8x8xf32>
    %cst_23 = arith.constant dense<0.000000e+00> : vector<8x8xf32>
    %28 = vector.multi_reduction <add>, %27, %cst_23 [2] : vector<8x8x8xf32> to vector<8x8xf32>
    %29 = vector.shape_cast %28 : vector<8x8xf32> to vector<8x8x1xf32>
    %30 = tpu.reciprocal %29 {approx = true} : vector<8x8x1xf32> -> vector<8x8x1xf32>
    %31 = vector.broadcast %30 : vector<8x8x1xf32> to vector<8x8x8xf32>
    %32 = arith.mulf %27, %31 : vector<8x8x8xf32>
    "tpu.trace_start"() <{level = 10 : i32, message = "bqk,bkd->bqd"}> : () -> ()
    %cst_24 = arith.constant dense<0.000000e+00> : vector<8x8x8xf32>
    %33 = tpu.matmul %32, %5, %cst_24 {dimension_numbers = #tpu.dot_dimension_numbers<[2], [1], [1], [2], [0, 0, 0, 1, 1, 2], [0], [0]>} : vector<8x8x8xf32>, vector<8x8x8xf32>, vector<8x8x8xf32> -> vector<8x8x8xf32>
    "tpu.trace_stop"() : () -> ()
    %c0_25 = arith.constant 0 : index
    %c0_26 = arith.constant 0 : index
    %c0_27 = arith.constant 0 : index
    %34 = vector.load %arg7[%c0_25, %c0_26, %c0_27] : memref<8x8x32xf32, #tpu.memory_space<vmem>>, vector<8x8x32xf32>
    "tpu.trace_start"() <{level = 10 : i32, message = "bsd,bde->bse"}> : () -> ()
    %cst_28 = arith.constant dense<0.000000e+00> : vector<8x8x32xf32>
    %35 = tpu.matmul %33, %34, %cst_28 {dimension_numbers = #tpu.dot_dimension_numbers<[2], [1], [1], [2], [0, 0, 0, 1, 1, 2], [0], [0]>} : vector<8x8x8xf32>, vector<8x8x32xf32>, vector<8x8x32xf32> -> vector<8x8x32xf32>
    "tpu.trace_stop"() : () -> ()
    %36 = vector.shape_cast %35 : vector<8x8x32xf32> to vector<2x4x8x32xf32>
    %37 = vector.extract_strided_slice %36 {offsets = [0, 0, 0, 0], sizes = [2, 1, 8, 32], strides = [1, 1, 1, 1]} : vector<2x4x8x32xf32> to vector<2x1x8x32xf32>
    %38 = vector.shape_cast %37 : vector<2x1x8x32xf32> to vector<2x8x32xf32>
    %39 = vector.extract_strided_slice %36 {offsets = [0, 1, 0, 0], sizes = [2, 1, 8, 32], strides = [1, 1, 1, 1]} : vector<2x4x8x32xf32> to vector<2x1x8x32xf32>
    %40 = vector.shape_cast %39 : vector<2x1x8x32xf32> to vector<2x8x32xf32>
    %41 = arith.addf %38, %40 : vector<2x8x32xf32>
    %42 = vector.extract_strided_slice %36 {offsets = [0, 2, 0, 0], sizes = [2, 1, 8, 32], strides = [1, 1, 1, 1]} : vector<2x4x8x32xf32> to vector<2x1x8x32xf32>
    %43 = vector.shape_cast %42 : vector<2x1x8x32xf32> to vector<2x8x32xf32>
    %44 = arith.addf %41, %43 : vector<2x8x32xf32>
    %45 = vector.extract_strided_slice %36 {offsets = [0, 3, 0, 0], sizes = [2, 1, 8, 32], strides = [1, 1, 1, 1]} : vector<2x4x8x32xf32> to vector<2x1x8x32xf32>
    %46 = vector.shape_cast %45 : vector<2x1x8x32xf32> to vector<2x8x32xf32>
    %47 = arith.addf %44, %46 : vector<2x8x32xf32>
    %48 = vector.shape_cast %47 : vector<2x8x32xf32> to vector<16x32xf32>
    %c0_29 = arith.constant 0 : index
    %c0_30 = arith.constant 0 : index
    %49 = vector.load %arg10[%c0_29, %c0_30] : memref<8x128xf32, #tpu.memory_space<vmem>>, vector<1x32xf32>
    %c1_31 = arith.constant 1 : index
    %c0_32 = arith.constant 0 : index
    %50 = vector.load %arg10[%c1_31, %c0_32] : memref<8x128xf32, #tpu.memory_space<vmem>>, vector<1x32xf32>
    %c2_33 = arith.constant 2 : index
    %c0_34 = arith.constant 0 : index
    %51 = vector.load %arg10[%c2_33, %c0_34] : memref<8x128xf32, #tpu.memory_space<vmem>>, vector<1x32xf32>
    %c3 = arith.constant 3 : index
    %c0_35 = arith.constant 0 : index
    %52 = vector.load %arg10[%c3, %c0_35] : memref<8x128xf32, #tpu.memory_space<vmem>>, vector<1x128xf32>
    %c4 = arith.constant 4 : index
    %c0_36 = arith.constant 0 : index
    %53 = vector.load %arg10[%c4, %c0_36] : memref<8x128xf32, #tpu.memory_space<vmem>>, vector<1x32xf32>
    %c5 = arith.constant 5 : index
    %c0_37 = arith.constant 0 : index
    %54 = vector.load %arg10[%c5, %c0_37] : memref<8x128xf32, #tpu.memory_space<vmem>>, vector<1x32xf32>
    %c6 = arith.constant 6 : index
    %c0_38 = arith.constant 0 : index
    %55 = vector.load %arg10[%c6, %c0_38] : memref<8x128xf32, #tpu.memory_space<vmem>>, vector<1x32xf32>
    %56 = vector.broadcast %49 : vector<1x32xf32> to vector<16x32xf32>
    %57 = arith.addf %48, %56 : vector<16x32xf32>
    %c0_39 = arith.constant 0 : index
    %c0_40 = arith.constant 0 : index
    %c0_41 = arith.constant 0 : index
    %58 = vector.load %arg4[%c0_39, %c0_40, %c0_41] : memref<2x8x32xf32, #tpu.memory_space<vmem>>, vector<2x8x32xf32>
    %59 = vector.shape_cast %58 : vector<2x8x32xf32> to vector<16x32xf32>
    %60 = arith.addf %57, %59 : vector<16x32xf32>
    %cst_42 = arith.constant dense<0.000000e+00> : vector<16xf32>
    %61 = vector.multi_reduction <add>, %60, %cst_42 [1] : vector<16x32xf32> to vector<16xf32>
    %62 = vector.shape_cast %61 : vector<16xf32> to vector<16x1xf32>
    %cst_43 = arith.constant 3.200000e+01 : f32
    %63 = vector.broadcast %cst_43 : f32 to vector<16x1xf32>
    %64 = arith.divf %62, %63 : vector<16x1xf32>
    %65 = vector.broadcast %64 : vector<16x1xf32> to vector<16x32xf32>
    %66 = arith.subf %60, %65 : vector<16x32xf32>
    %67 = vector.broadcast %64 : vector<16x1xf32> to vector<16x32xf32>
    %68 = arith.subf %60, %67 : vector<16x32xf32>
    %69 = arith.mulf %66, %68 : vector<16x32xf32>
    %cst_44 = arith.constant dense<0.000000e+00> : vector<16xf32>
    %70 = vector.multi_reduction <add>, %69, %cst_44 [1] : vector<16x32xf32> to vector<16xf32>
    %71 = vector.shape_cast %70 : vector<16xf32> to vector<16x1xf32>
    %cst_45 = arith.constant 3.200000e+01 : f32
    %72 = vector.broadcast %cst_45 : f32 to vector<16x1xf32>
    %73 = arith.divf %71, %72 : vector<16x1xf32>
    %74 = vector.broadcast %64 : vector<16x1xf32> to vector<16x32xf32>
    %75 = arith.subf %60, %74 : vector<16x32xf32>
    %cst_46 = arith.constant 9.99999974E-6 : f32
    %76 = vector.broadcast %cst_46 : f32 to vector<16x1xf32>
    %77 = arith.addf %73, %76 : vector<16x1xf32>
    %78 = math.rsqrt %77 : vector<16x1xf32>
    %79 = vector.broadcast %78 : vector<16x1xf32> to vector<16x32xf32>
    %80 = arith.mulf %75, %79 : vector<16x32xf32>
    %81 = vector.broadcast %50 : vector<1x32xf32> to vector<16x32xf32>
    %82 = arith.mulf %80, %81 : vector<16x32xf32>
    %83 = vector.broadcast %51 : vector<1x32xf32> to vector<16x32xf32>
    %84 = arith.addf %82, %83 : vector<16x32xf32>
    %c0_47 = arith.constant 0 : index
    %c0_48 = arith.constant 0 : index
    %85 = vector.load %arg8[%c0_47, %c0_48] : memref<32x128xf32, #tpu.memory_space<vmem>>, vector<32x128xf32>
    %cst_49 = arith.constant dense<0.000000e+00> : vector<16x128xf32>
    %86 = tpu.matmul %84, %85, %cst_49 {dimension_numbers = #tpu.dot_dimension_numbers<[1], [0], [0], [1], [0, 0, 1, 1], [], []>} : vector<16x32xf32>, vector<32x128xf32>, vector<16x128xf32> -> vector<16x128xf32>
    %87 = vector.broadcast %52 : vector<1x128xf32> to vector<16x128xf32>
    %88 = arith.addf %86, %87 : vector<16x128xf32>
    %cst_50 = arith.constant 0.000000e+00 : f32
    %89 = vector.broadcast %cst_50 : f32 to vector<16x128xf32>
    %90 = arith.maximumf %88, %89 : vector<16x128xf32>
    %c0_51 = arith.constant 0 : index
    %c0_52 = arith.constant 0 : index
    %91 = vector.load %arg9[%c0_51, %c0_52] : memref<128x32xf32, #tpu.memory_space<vmem>>, vector<128x32xf32>
    %cst_53 = arith.constant dense<0.000000e+00> : vector<16x32xf32>
    %92 = tpu.matmul %90, %91, %cst_53 {dimension_numbers = #tpu.dot_dimension_numbers<[1], [0], [0], [1], [0, 0, 1, 1], [], []>} : vector<16x128xf32>, vector<128x32xf32>, vector<16x32xf32> -> vector<16x32xf32>
    %93 = vector.broadcast %53 : vector<1x32xf32> to vector<16x32xf32>
    %94 = arith.addf %92, %93 : vector<16x32xf32>
    %95 = arith.addf %94, %84 : vector<16x32xf32>
    %cst_54 = arith.constant dense<0.000000e+00> : vector<16xf32>
    %96 = vector.multi_reduction <add>, %95, %cst_54 [1] : vector<16x32xf32> to vector<16xf32>
    %97 = vector.shape_cast %96 : vector<16xf32> to vector<16x1xf32>
    %cst_55 = arith.constant 3.200000e+01 : f32
    %98 = vector.broadcast %cst_55 : f32 to vector<16x1xf32>
    %99 = arith.divf %97, %98 : vector<16x1xf32>
    %100 = vector.broadcast %99 : vector<16x1xf32> to vector<16x32xf32>
    %101 = arith.subf %95, %100 : vector<16x32xf32>
    %102 = vector.broadcast %99 : vector<16x1xf32> to vector<16x32xf32>
    %103 = arith.subf %95, %102 : vector<16x32xf32>
    %104 = arith.mulf %101, %103 : vector<16x32xf32>
    %cst_56 = arith.constant dense<0.000000e+00> : vector<16xf32>
    %105 = vector.multi_reduction <add>, %104, %cst_56 [1] : vector<16x32xf32> to vector<16xf32>
    %106 = vector.shape_cast %105 : vector<16xf32> to vector<16x1xf32>
    %cst_57 = arith.constant 3.200000e+01 : f32
    %107 = vector.broadcast %cst_57 : f32 to vector<16x1xf32>
    %108 = arith.divf %106, %107 : vector<16x1xf32>
    %109 = vector.broadcast %99 : vector<16x1xf32> to vector<16x32xf32>
    %110 = arith.subf %95, %109 : vector<16x32xf32>
    %cst_58 = arith.constant 9.99999974E-6 : f32
    %111 = vector.broadcast %cst_58 : f32 to vector<16x1xf32>
    %112 = arith.addf %108, %111 : vector<16x1xf32>
    %113 = math.rsqrt %112 : vector<16x1xf32>
    %114 = vector.broadcast %113 : vector<16x1xf32> to vector<16x32xf32>
    %115 = arith.mulf %110, %114 : vector<16x32xf32>
    %116 = vector.broadcast %54 : vector<1x32xf32> to vector<16x32xf32>
    %117 = arith.mulf %115, %116 : vector<16x32xf32>
    %118 = vector.broadcast %55 : vector<1x32xf32> to vector<16x32xf32>
    %119 = arith.addf %117, %118 : vector<16x32xf32>
    %c0_59 = arith.constant 0 : index
    %c0_60 = arith.constant 0 : index
    %120 = vector.load %arg11[%c0_59, %c0_60] : memref<16x32xf32, #tpu.memory_space<vmem>>, vector<16x32xf32>
    tpu.vector_store %arg11[%c0_59, %c0_60], %119 {strides = array<i32>} : memref<16x32xf32, #tpu.memory_space<vmem>>, vector<16x32xf32>,
    return
  }
  func.func @transform_0(%arg0: i32) -> (i32, i32, i32) {
    %c0_i32 = arith.constant 0 : i32
    %c0_i32_0 = arith.constant 0 : i32
    %c0_i32_1 = arith.constant 0 : i32
    %c0_i32_2 = arith.constant 0 : i32
    return %c0_i32, %c0_i32_0, %c0_i32_1 : i32, i32, i32
  }
  func.func @transform_1(%arg0: i32) -> (i32, i32, i32) {
    %c0_i32 = arith.constant 0 : i32
    %c0_i32_0 = arith.constant 0 : i32
    %c0_i32_1 = arith.constant 0 : i32
    %c0_i32_2 = arith.constant 0 : i32
    return %c0_i32, %c0_i32_0, %c0_i32_1 : i32, i32, i32
  }
  func.func @transform_2(%arg0: i32) -> (i32, i32, i32) {
    %c0_i32 = arith.constant 0 : i32
    %c0_i32_0 = arith.constant 0 : i32
    %c0_i32_1 = arith.constant 0 : i32
    %c0_i32_2 = arith.constant 0 : i32
    return %c0_i32, %c0_i32_0, %c0_i32_1 : i32, i32, i32
  }
  func.func @transform_3(%arg0: i32) -> (i32, i32, i32) {
    %c0_i32 = arith.constant 0 : i32
    %c0_i32_0 = arith.constant 0 : i32
    %c0_i32_1 = arith.constant 0 : i32
    %c0_i32_2 = arith.constant 0 : i32
    return %c0_i32, %c0_i32_0, %c0_i32_1 : i32, i32, i32
  }
  func.func @transform_4(%arg0: i32) -> (i32, i32, i32) {
    %c0_i32 = arith.constant 0 : i32
    %c0_i32_0 = arith.constant 0 : i32
    %c0_i32_1 = arith.constant 0 : i32
    %c0_i32_2 = arith.constant 0 : i32
    return %c0_i32, %c0_i32_0, %c0_i32_1 : i32, i32, i32
  }
  func.func @transform_5(%arg0: i32) -> (i32, i32, i32) {
    %c0_i32 = arith.constant 0 : i32
    %c0_i32_0 = arith.constant 0 : i32
    %c0_i32_1 = arith.constant 0 : i32
    %c0_i32_2 = arith.constant 0 : i32
    return %c0_i32, %c0_i32_0, %c0_i32_1 : i32, i32, i32
  }
  func.func @transform_6(%arg0: i32) -> (i32, i32, i32) {
    %c0_i32 = arith.constant 0 : i32
    %c0_i32_0 = arith.constant 0 : i32
    %c0_i32_1 = arith.constant 0 : i32
    %c0_i32_2 = arith.constant 0 : i32
    return %c0_i32, %c0_i32_0, %c0_i32_1 : i32, i32, i32
  }
  func.func @transform_7(%arg0: i32) -> (i32, i32) {
    %c0_i32 = arith.constant 0 : i32
    %c0_i32_0 = arith.constant 0 : i32
    %c0_i32_1 = arith.constant 0 : i32
    return %c0_i32, %c0_i32_0 : i32, i32
  }
  func.func @transform_8(%arg0: i32) -> (i32, i32) {
    %c0_i32 = arith.constant 0 : i32
    %c0_i32_0 = arith.constant 0 : i32
    %c0_i32_1 = arith.constant 0 : i32
    return %c0_i32, %c0_i32_0 : i32, i32
  }
  func.func @transform_9(%arg0: i32) -> (i32, i32) {
    %c0_i32 = arith.constant 0 : i32
    %c0_i32_0 = arith.constant 0 : i32
    %c0_i32_1 = arith.constant 0 : i32
    return %c0_i32, %c0_i32_0 : i32, i32
  }
  func.func @transform_10(%arg0: i32) -> (i32, i32) {
    %c0_i32 = arith.constant 0 : i32
    %c0_i32_0 = arith.constant 0 : i32
    %c0_i32_1 = arith.constant 0 : i32
    return %c0_i32, %c0_i32_0 : i32, i32
  }
}

</mosaic_0001>

<llo_original>
// kernel: tpu_custom_call.1
$region0: #{tpu_custom_call.1}
  #allocation0 [shape = 'u32[]', space=smem, size = 0x4, offset = 0x4, fixed_abs, tag = 'smem constant byte address 0x4 - core index']
  #allocation1 [shape = 'u32[72,128]{1,0:T(1,128)}', space=vmem, size = 0x9000, scoped, tag = 'internal scratch']
  %s0 = inlined_call_operand.vmem [shape: f32[8,8,8], index: 0, kind: input, shape index: {}]
  %s1 = inlined_call_operand.vmem [shape: f32[8,8,8], index: 1, kind: input, shape index: {}]
  %s2 = inlined_call_operand.hbm [shape: f32[8,8,8], index: 2, kind: input, shape index: {}]
  %s3 = inlined_call_operand.hbm [shape: f32[2,8,32], index: 3, kind: input, shape index: {}]
  %s4 = inlined_call_operand.hbm [shape: f32[8,8,8], index: 4, kind: input, shape index: {}]
  %s5 = inlined_call_operand.hbm [shape: f32[3,8,8], index: 5, kind: input, shape index: {}]
  %s6 = inlined_call_operand.hbm [shape: f32[8,8,32], index: 6, kind: input, shape index: {}]
  %s7 = inlined_call_operand.vmem [shape: f32[32,128], index: 7, kind: input, shape index: {}]
  %s8 = inlined_call_operand.vmem [shape: f32[128,32], index: 8, kind: input, shape index: {}]
  %s9 = inlined_call_operand.hbm [shape: f32[8,128], index: 9, kind: input, shape index: {}]
  %s10 = inlined_call_operand.hbm [shape: f32[16,32], index: 10, kind: output, shape index: {}]
  %s11 = sld [smem:[#allocation0]]
  $region74: #{tpu_custom_call.1} parent=0
    _
  %s13 = ssub.s32 1, %s11
  %s14 = scalar_select 0, %s13, %s11
  $region1: #{tpu_custom_call.1} parent=0
    #allocation2 [shape = 'u8[32768]{0}', space=vmem, size = 0x8000, scoped, tag = 'input window, operand 2, single buffered']
    #allocation3 [shape = 's32[1]{0}', space=sflag, size = 0x4, scoped, tag = 'scoped memory for tpu_custom_call.1']
    #allocation4 [shape = 's32[1]{0}', space=sflag, size = 0x4, scoped, tag = 'scoped memory for tpu_custom_call.1']
    #allocation5 [shape = 'u8[8192]{0}', space=vmem, size = 0x2000, scoped, tag = 'input window, operand 3, single buffered']
    #allocation6 [shape = 's32[1]{0}', space=sflag, size = 0x4, scoped, tag = 'scoped memory for tpu_custom_call.1']
    #allocation7 [shape = 'u8[32768]{0}', space=vmem, size = 0x8000, scoped, tag = 'input window, operand 4, single buffered']
    #allocation8 [shape = 'u8[12288]{0}', space=vmem, size = 0x3000, scoped, tag = 'input window, operand 5, single buffered']
    #allocation9 [shape = 's32[1]{0}', space=sflag, size = 0x4, scoped, tag = 'scoped memory for tpu_custom_call.1']
    #allocation10 [shape = 'u8[32768]{0}', space=vmem, size = 0x8000, scoped, tag = 'input window, operand 6, single buffered']
    #allocation11 [shape = 'u8[4096]{0}', space=vmem, size = 0x1000, scoped, tag = 'input window, operand 9, single buffered']
    #allocation12 [shape = 's32[1]{0}', space=sflag, size = 0x4, scoped, tag = 'scoped memory for tpu_custom_call.1']
    #allocation13 [shape = 'u8[8192]{0}', space=vmem, size = 0x2000, scoped, tag = 'output window, operand 0, single buffered']
    %15 = vsyncpa [#allocation3], 0
    %16 = vsyncpa [#allocation6], 0
    %17 = vsyncpa [#allocation9], 0
    %18 = vsyncpa [#allocation12], 0
    %19 = vsyncpa [#allocation4], 0
    // Predicated region
    $region2: #{tpu_custom_call.1} parent=1 // pred_check
      _
    $region3: #{tpu_custom_call.1} parent=1 // pred_check_branch
      %21 = sbr.rel (0) target = $region5
    $region4: #{tpu_custom_call.1} parent=1 // pred_region
      _
    $region5: #{tpu_custom_call.1} parent=1 // pred_fallthru
      _
    // Predicated region
    $region6: #{tpu_custom_call.1} parent=1 // pred_check
      _
    $region7: #{tpu_custom_call.1} parent=1 // pred_check_branch
      %23 = sbr.rel (0) target = $region9
    $region8: #{tpu_custom_call.1} parent=1 // pred_region
      _
    $region9: #{tpu_custom_call.1} parent=1 // pred_fallthru
      _
    // Predicated region
    $region10: #{tpu_custom_call.1} parent=1 // pred_check
      _
    $region11: #{tpu_custom_call.1} parent=1 // pred_check_branch
      %25 = sbr.rel (0) target = $region13
    $region12: #{tpu_custom_call.1} parent=1 // pred_region
      %27 = vsyncadd [#allocation3], 0
      %s28 = sshll.u32 %s2, 4
      %s29 = int_to_ptr.hbm [resolvable:$true] %s28
      %s30 = sshll.u32 [#allocation2], 4
      %s31 = int_to_ptr.vmem [resolvable:$true] %s30
      %36 = dma.hbm_to_vmem [thread:$0]  %s29, 1024, %s31, [#allocation3], 128, 128, 8
    $region13: #{tpu_custom_call.1} parent=1 // pred_fallthru
      _
    // Predicated region
    $region14: #{tpu_custom_call.1} parent=1 // pred_check
      _
    $region15: #{tpu_custom_call.1} parent=1 // pred_check_branch
      %38 = sbr.rel (0) target = $region17
    $region16: #{tpu_custom_call.1} parent=1 // pred_region
      %40 = vsyncadd [#allocation6], 0
      %s41 = sshll.u32 %s3, 4
      %s42 = int_to_ptr.hbm [resolvable:$true] %s41
      %s43 = sshll.u32 [#allocation5], 4
      %s44 = int_to_ptr.vmem [resolvable:$true] %s43
      %49 = dma.hbm_to_vmem [thread:$0]  %s42, 256, %s44, [#allocation6], 128, 128, 8
    $region17: #{tpu_custom_call.1} parent=1 // pred_fallthru
      _
    // Predicated region
    $region18: #{tpu_custom_call.1} parent=1 // pred_check
      _
    $region19: #{tpu_custom_call.1} parent=1 // pred_check_branch
      %51 = sbr.rel (0) target = $region21
    $region20: #{tpu_custom_call.1} parent=1 // pred_region
      %53 = vsyncadd [#allocation6], 0
      %s54 = sshll.u32 %s4, 4
      %s55 = int_to_ptr.hbm [resolvable:$true] %s54
      %s56 = sshll.u32 [#allocation7], 4
      %s57 = int_to_ptr.vmem [resolvable:$true] %s56
      %62 = dma.hbm_to_vmem [thread:$0]  %s55, 1024, %s57, [#allocation6], 128, 128, 8
    $region21: #{tpu_custom_call.1} parent=1 // pred_fallthru
      _
    // Predicated region
    $region22: #{tpu_custom_call.1} parent=1 // pred_check
      _
    $region23: #{tpu_custom_call.1} parent=1 // pred_check_branch
      %64 = sbr.rel (0) target = $region25
    $region24: #{tpu_custom_call.1} parent=1 // pred_region
      %66 = vsyncadd [#allocation9], 0
      %s67 = sshll.u32 %s5, 4
      %s68 = int_to_ptr.hbm [resolvable:$true] %s67
      %s69 = sshll.u32 [#allocation8], 4
      %s70 = int_to_ptr.vmem [resolvable:$true] %s69
      %75 = dma.hbm_to_vmem [thread:$0]  %s68, 384, %s70, [#allocation9], 128, 128, 8
    $region25: #{tpu_custom_call.1} parent=1 // pred_fallthru
      _
    // Predicated region
    $region26: #{tpu_custom_call.1} parent=1 // pred_check
      _
    $region27: #{tpu_custom_call.1} parent=1 // pred_check_branch
      %77 = sbr.rel (0) target = $region29
    $region28: #{tpu_custom_call.1} parent=1 // pred_region
      %79 = vsyncadd [#allocation9], 0
      %s80 = sshll.u32 %s6, 4
      %s81 = int_to_ptr.hbm [resolvable:$true] %s80
      %s82 = sshll.u32 [#allocation10], 4
      %s83 = int_to_ptr.vmem [resolvable:$true] %s82
      %88 = dma.hbm_to_vmem [thread:$0]  %s81, 1024, %s83, [#allocation9], 128, 128, 8
    $region29: #{tpu_custom_call.1} parent=1 // pred_fallthru
      _
    // Predicated region
    $region30: #{tpu_custom_call.1} parent=1 // pred_check
      _
    $region31: #{tpu_custom_call.1} parent=1 // pred_check_branch
      %90 = sbr.rel (0) target = $region33
    $region32: #{tpu_custom_call.1} parent=1 // pred_region
      _
    $region33: #{tpu_custom_call.1} parent=1 // pred_fallthru
      _
    // Predicated region
    $region34: #{tpu_custom_call.1} parent=1 // pred_check
      _
    $region35: #{tpu_custom_call.1} parent=1 // pred_check_branch
      %92 = sbr.rel (0) target = $region37
    $region36: #{tpu_custom_call.1} parent=1 // pred_region
      _
    $region37: #{tpu_custom_call.1} parent=1 // pred_fallthru
      _
    // Predicated region
    $region38: #{tpu_custom_call.1} parent=1 // pred_check
      _
    $region39: #{tpu_custom_call.1} parent=1 // pred_check_branch
      %94 = sbr.rel (0) target = $region41
    $region40: #{tpu_custom_call.1} parent=1 // pred_region
      %96 = vsyncadd [#allocation12], 0
      %s98 = sshll.u32 %s9, 4
      %s99 = int_to_ptr.hbm [resolvable:$true] %s98
      %s100 = sshll.u32 [#allocation11], 4
      %s101 = int_to_ptr.vmem [resolvable:$true] %s100
      %103 = dma.hbm_to_vmem [thread:$0]  %s99, 128, %s101, [#allocation12]
    $region41: #{tpu_custom_call.1} parent=1 // pred_fallthru
      _
    // Predicated region
    $region42: #{tpu_custom_call.1} parent=1 // pred_check
      _
    $region43: #{tpu_custom_call.1} parent=1 // pred_check_branch
      %105 = sbr.rel (0) target = $region45
    $region44: #{tpu_custom_call.1} parent=1 // pred_region
      %107 = dma.done [#allocation3], 1024
    $region45: #{tpu_custom_call.1} parent=1 // pred_fallthru
      _
    // Predicated region
    $region46: #{tpu_custom_call.1} parent=1 // pred_check
      _
    $region47: #{tpu_custom_call.1} parent=1 // pred_check_branch
      %109 = sbr.rel (0) target = $region49
    $region48: #{tpu_custom_call.1} parent=1 // pred_region
      %111 = dma.done [#allocation6], 256
    $region49: #{tpu_custom_call.1} parent=1 // pred_fallthru
      _
    // Predicated region
    $region50: #{tpu_custom_call.1} parent=1 // pred_check
      _
    $region51: #{tpu_custom_call.1} parent=1 // pred_check_branch
      %113 = sbr.rel (0) target = $region53
    $region52: #{tpu_custom_call.1} parent=1 // pred_region
      %115 = dma.done [#allocation6], 1024
    $region53: #{tpu_custom_call.1} parent=1 // pred_fallthru
      _
    // Predicated region
    $region54: #{tpu_custom_call.1} parent=1 // pred_check
      _
    $region55: #{tpu_custom_call.1} parent=1 // pred_check_branch
      %117 = sbr.rel (0) target = $region57
    $region56: #{tpu_custom_call.1} parent=1 // pred_region
      %119 = dma.done [#allocation9], 384
    $region57: #{tpu_custom_call.1} parent=1 // pred_fallthru
      _
    // Predicated region
    $region58: #{tpu_custom_call.1} parent=1 // pred_check
      _
    $region59: #{tpu_custom_call.1} parent=1 // pred_check_branch
      %121 = sbr.rel (0) target = $region61
    $region60: #{tpu_custom_call.1} parent=1 // pred_region
      %123 = dma.done [#allocation9], 1024
    $region61: #{tpu_custom_call.1} parent=1 // pred_fallthru
      _
    // Predicated region
    $region62: #{tpu_custom_call.1} parent=1 // pred_check
      _
    $region63: #{tpu_custom_call.1} parent=1 // pred_check_branch
      %125 = sbr.rel (0) target = $region65
    $region64: #{tpu_custom_call.1} parent=1 // pred_region
      %127 = dma.done [#allocation12], 128
    $region65: #{tpu_custom_call.1} parent=1 // pred_fallthru
      _
    %v128 = vld [vmem:[#allocation8] sm:$0xff]
    %v129 = vld [vmem:[%s0] sm:$0xff]
    %v130 = vld [vmem:[%s0 + $0x8] sm:$0xff]
    %v131 = vld [vmem:[%s0 + $0x10] sm:$0xff]
    %v132 = vld [vmem:[%s0 + $0x18] sm:$0xff]
    %v133 = vld [vmem:[%s0 + $0x20] sm:$0xff]
    %v134 = vld [vmem:[%s0 + $0x28] sm:$0xff]
    %v135 = vld [vmem:[%s0 + $0x30] sm:$0xff]
    %v136 = vld [vmem:[%s0 + $0x38] sm:$0xff]
    %vm137 = vcmask 64512
    %v139 = vsel %vm137, %v129, 0
    %v142 = vsel %vm137, %v130, 0
    %v145 = vsel %vm137, %v131, 0
    %v148 = vsel %vm137, %v132, 0
    %v151 = vsel %vm137, %v133, 0
    %v154 = vsel %vm137, %v134, 0
    %v157 = vsel %vm137, %v135, 0
    %v160 = vsel %vm137, %v136, 0
    %162 = vmatpush.msra.mxu0 0.0
    %163 = vmatpush.msra.mxu0 0.0
    %164 = vmatpush.msra.mxu0 0.0
    %165 = vmatpush.msra.mxu0 0.0
    %166 = vmatpush.msra.mxu0 0.0
    %167 = vmatpush.msra.mxu0 0.0
    %168 = vmatpush.msra.mxu0 0.0
    %169 = vmatpush.msra.mxu0 0.0
    %170 = vmatpush.msra.mxu0 0.0
    %171 = vmatpush.msra.mxu0 0.0
    %172 = vmatpush.msra.mxu0 0.0
    %173 = vmatpush.msra.mxu0 0.0
    %174 = vmatpush.msra.mxu0 0.0
    %175 = vmatpush.msra.mxu0 0.0
    %176 = vmatpush.msra.mxu0 0.0
    %177 = vmatpush.msra.mxu0 %v128
    %178 = vmatmul.f32.gmra.mxu0 %v139
    %v179 = vpop.f32.mrf.mxu0
    %v180 = vadd.f32 0.0, %v179
    %181 = vmatmul.f32.gmra.mxu0 %v142
    %v182 = vpop.f32.mrf.mxu0
    %v183 = vadd.f32 0.0, %v182
    %184 = vmatmul.f32.gmra.mxu0 %v145
    %v185 = vpop.f32.mrf.mxu0
    %v186 = vadd.f32 0.0, %v185
    %187 = vmatmul.f32.gmra.mxu0 %v148
    %v188 = vpop.f32.mrf.mxu0
    %v189 = vadd.f32 0.0, %v188
    %190 = vmatmul.f32.gmra.mxu0 %v151
    %v191 = vpop.f32.mrf.mxu0
    %v192 = vadd.f32 0.0, %v191
    %193 = vmatmul.f32.gmra.mxu0 %v154
    %v194 = vpop.f32.mrf.mxu0
    %v195 = vadd.f32 0.0, %v194
    %196 = vmatmul.f32.gmra.mxu0 %v157
    %v197 = vpop.f32.mrf.mxu0
    %v198 = vadd.f32 0.0, %v197
    %199 = vmatmul.f32.gmra.mxu0 %v160
    %v200 = vpop.f32.mrf.mxu0
    %v201 = vadd.f32 0.0, %v200
    %202 = vdwg.mxu0
    %s203 = scalar_lea.vmem [#allocation8], 8
    %v204 = vld [vmem:[%s203] sm:$0xff]
    %v205 = vld [vmem:[%s1] sm:$0xff]
    %v206 = vld [vmem:[%s1 + $0x8] sm:$0xff]
    %v207 = vld [vmem:[%s1 + $0x10] sm:$0xff]
    %v208 = vld [vmem:[%s1 + $0x18] sm:$0xff]
    %v209 = vld [vmem:[%s1 + $0x20] sm:$0xff]
    %v210 = vld [vmem:[%s1 + $0x28] sm:$0xff]
    %v211 = vld [vmem:[%s1 + $0x30] sm:$0xff]
    %v212 = vld [vmem:[%s1 + $0x38] sm:$0xff]
    %v214 = vsel %vm137, %v205, 0
    %v217 = vsel %vm137, %v206, 0
    %v220 = vsel %vm137, %v207, 0
    %v223 = vsel %vm137, %v208, 0
    %v226 = vsel %vm137, %v209, 0
    %v229 = vsel %vm137, %v210, 0
    %v232 = vsel %vm137, %v211, 0
    %v235 = vsel %vm137, %v212, 0
    %237 = vmatpush.msra.mxu0 0.0
    %238 = vmatpush.msra.mxu0 0.0
    %239 = vmatpush.msra.mxu0 0.0
    %240 = vmatpush.msra.mxu0 0.0
    %241 = vmatpush.msra.mxu0 0.0
    %242 = vmatpush.msra.mxu0 0.0
    %243 = vmatpush.msra.mxu0 0.0
    %244 = vmatpush.msra.mxu0 0.0
    %245 = vmatpush.msra.mxu0 0.0
    %246 = vmatpush.msra.mxu0 0.0
    %247 = vmatpush.msra.mxu0 0.0
    %248 = vmatpush.msra.mxu0 0.0
    %249 = vmatpush.msra.mxu0 0.0
    %250 = vmatpush.msra.mxu0 0.0
    %251 = vmatpush.msra.mxu0 0.0
    %252 = vmatpush.msra.mxu0 %v204
    %253 = vmatmul.f32.gmra.mxu0 %v214
    %v254 = vpop.f32.mrf.mxu0
    %v255 = vadd.f32 0.0, %v254
    %256 = vmatmul.f32.gmra.mxu0 %v217
    %v257 = vpop.f32.mrf.mxu0
    %v258 = vadd.f32 0.0, %v257
    %259 = vmatmul.f32.gmra.mxu0 %v220
    %v260 = vpop.f32.mrf.mxu0
    %v261 = vadd.f32 0.0, %v260
    %262 = vmatmul.f32.gmra.mxu0 %v223
    %v263 = vpop.f32.mrf.mxu0
    %v264 = vadd.f32 0.0, %v263
    %265 = vmatmul.f32.gmra.mxu0 %v226
    %v266 = vpop.f32.mrf.mxu0
    %v267 = vadd.f32 0.0, %v266
    %268 = vmatmul.f32.gmra.mxu0 %v229
    %v269 = vpop.f32.mrf.mxu0
    %v270 = vadd.f32 0.0, %v269
    %271 = vmatmul.f32.gmra.mxu0 %v232
    %v272 = vpop.f32.mrf.mxu0
    %v273 = vadd.f32 0.0, %v272
    %274 = vmatmul.f32.gmra.mxu0 %v235
    %v275 = vpop.f32.mrf.mxu0
    %v276 = vadd.f32 0.0, %v275
    %277 = vdwg.mxu0
    %s278 = scalar_lea.vmem [#allocation8], 16
    %v279 = vld [vmem:[%s278] sm:$0xff]
    %v280 = vld [vmem:[#allocation2] sm:$0xff]
    %v281 = vld [vmem:[#allocation2 + $0x8] sm:$0xff]
    %v282 = vld [vmem:[#allocation2 + $0x10] sm:$0xff]
    %v283 = vld [vmem:[#allocation2 + $0x18] sm:$0xff]
    %v284 = vld [vmem:[#allocation2 + $0x20] sm:$0xff]
    %v285 = vld [vmem:[#allocation2 + $0x28] sm:$0xff]
    %v286 = vld [vmem:[#allocation2 + $0x30] sm:$0xff]
    %v287 = vld [vmem:[#allocation2 + $0x38] sm:$0xff]
    %v289 = vsel %vm137, %v280, 0
    %v292 = vsel %vm137, %v281, 0
    %v295 = vsel %vm137, %v282, 0
    %v298 = vsel %vm137, %v283, 0
    %v301 = vsel %vm137, %v284, 0
    %v304 = vsel %vm137, %v285, 0
    %v307 = vsel %vm137, %v286, 0
    %v310 = vsel %vm137, %v287, 0
    %312 = vmatpush.msra.mxu0 0.0
    %313 = vmatpush.msra.mxu0 0.0
    %314 = vmatpush.msra.mxu0 0.0
    %315 = vmatpush.msra.mxu0 0.0
    %316 = vmatpush.msra.mxu0 0.0
    %317 = vmatpush.msra.mxu0 0.0
    %318 = vmatpush.msra.mxu0 0.0
    %319 = vmatpush.msra.mxu0 0.0
    %320 = vmatpush.msra.mxu0 0.0
    %321 = vmatpush.msra.mxu0 0.0
    %322 = vmatpush.msra.mxu0 0.0
    %323 = vmatpush.msra.mxu0 0.0
    %324 = vmatpush.msra.mxu0 0.0
    %325 = vmatpush.msra.mxu0 0.0
    %326 = vmatpush.msra.mxu0 0.0
    %327 = vmatpush.msra.mxu0 %v279
    %328 = vmatmul.f32.gmra.mxu0 %v289
    %v329 = vpop.f32.mrf.mxu0
    %v330 = vadd.f32 0.0, %v329
    %331 = vmatmul.f32.gmra.mxu0 %v292
    %v332 = vpop.f32.mrf.mxu0
    %v333 = vadd.f32 0.0, %v332
    %334 = vmatmul.f32.gmra.mxu0 %v295
    %v335 = vpop.f32.mrf.mxu0
    %v336 = vadd.f32 0.0, %v335
    %337 = vmatmul.f32.gmra.mxu0 %v298
    %v338 = vpop.f32.mrf.mxu0
    %v339 = vadd.f32 0.0, %v338
    %340 = vmatmul.f32.gmra.mxu0 %v301
    %v341 = vpop.f32.mrf.mxu0
    %v342 = vadd.f32 0.0, %v341
    %343 = vmatmul.f32.gmra.mxu0 %v304
    %v344 = vpop.f32.mrf.mxu0
    %v345 = vadd.f32 0.0, %v344
    %346 = vmatmul.f32.gmra.mxu0 %v307
    %v347 = vpop.f32.mrf.mxu0
    %v348 = vadd.f32 0.0, %v347
    %349 = vmatmul.f32.gmra.mxu0 %v310
    %v350 = vpop.f32.mrf.mxu0
    %v351 = vadd.f32 0.0, %v350
    %352 = vdwg.mxu0
    %v354 = vsel %vm137, %v330, 0
    %v357 = vsel %vm137, %v255, 0
    %359 = vmatpush.xpose.msra.mxu0 0.0
    %360 = vmatpush.xpose.msra.mxu0 0.0
    %361 = vmatpush.xpose.msra.mxu0 0.0
    %362 = vmatpush.xpose.msra.mxu0 0.0
    %363 = vmatpush.xpose.msra.mxu0 0.0
    %364 = vmatpush.xpose.msra.mxu0 0.0
    %365 = vmatpush.xpose.msra.mxu0 0.0
    %366 = vmatpush.xpose.msra.mxu0 0.0
    %367 = vmatpush.xpose.msra.mxu0 0.0
    %368 = vmatpush.xpose.msra.mxu0 0.0
    %369 = vmatpush.xpose.msra.mxu0 0.0
    %370 = vmatpush.xpose.msra.mxu0 0.0
    %371 = vmatpush.xpose.msra.mxu0 0.0
    %372 = vmatpush.xpose.msra.mxu0 0.0
    %373 = vmatpush.xpose.msra.mxu0 0.0
    %374 = vmatpush.xpose.msra.mxu0 %v357
    %375 = vmatmul.f32.gmra.mxu0 %v354
    %v376 = vpop.f32.mrf.mxu0
    %v377 = vadd.f32 0.0, %v376
    %378 = vdwg.mxu0
    %v380 = vsel %vm137, %v333, 0
    %v383 = vsel %vm137, %v258, 0
    %385 = vmatpush.xpose.msra.mxu0 0.0
    %386 = vmatpush.xpose.msra.mxu0 0.0
    %387 = vmatpush.xpose.msra.mxu0 0.0
    %388 = vmatpush.xpose.msra.mxu0 0.0
    %389 = vmatpush.xpose.msra.mxu0 0.0
    %390 = vmatpush.xpose.msra.mxu0 0.0
    %391 = vmatpush.xpose.msra.mxu0 0.0
    %392 = vmatpush.xpose.msra.mxu0 0.0
    %393 = vmatpush.xpose.msra.mxu0 0.0
    %394 = vmatpush.xpose.msra.mxu0 0.0
    %395 = vmatpush.xpose.msra.mxu0 0.0
    %396 = vmatpush.xpose.msra.mxu0 0.0
    %397 = vmatpush.xpose.msra.mxu0 0.0
    %398 = vmatpush.xpose.msra.mxu0 0.0
    %399 = vmatpush.xpose.msra.mxu0 0.0
    %400 = vmatpush.xpose.msra.mxu0 %v383
    %401 = vmatmul.f32.gmra.mxu0 %v380
    %v402 = vpop.f32.mrf.mxu0
    %v403 = vadd.f32 0.0, %v402
    %404 = vdwg.mxu0
    %v406 = vsel %vm137, %v336, 0
    %v409 = vsel %vm137, %v261, 0
    %411 = vmatpush.xpose.msra.mxu0 0.0
    %412 = vmatpush.xpose.msra.mxu0 0.0
    %413 = vmatpush.xpose.msra.mxu0 0.0
    %414 = vmatpush.xpose.msra.mxu0 0.0
    %415 = vmatpush.xpose.msra.mxu0 0.0
    %416 = vmatpush.xpose.msra.mxu0 0.0
    %417 = vmatpush.xpose.msra.mxu0 0.0
    %418 = vmatpush.xpose.msra.mxu0 0.0
    %419 = vmatpush.xpose.msra.mxu0 0.0
    %420 = vmatpush.xpose.msra.mxu0 0.0
    %421 = vmatpush.xpose.msra.mxu0 0.0
    %422 = vmatpush.xpose.msra.mxu0 0.0
    %423 = vmatpush.xpose.msra.mxu0 0.0
    %424 = vmatpush.xpose.msra.mxu0 0.0
    %425 = vmatpush.xpose.msra.mxu0 0.0
    %426 = vmatpush.xpose.msra.mxu0 %v409
    %427 = vmatmul.f32.gmra.mxu0 %v406
    %v428 = vpop.f32.mrf.mxu0
    %v429 = vadd.f32 0.0, %v428
    %430 = vdwg.mxu0
    %v432 = vsel %vm137, %v339, 0
    %v435 = vsel %vm137, %v264, 0
    %437 = vmatpush.xpose.msra.mxu0 0.0
    %438 = vmatpush.xpose.msra.mxu0 0.0
    %439 = vmatpush.xpose.msra.mxu0 0.0
    %440 = vmatpush.xpose.msra.mxu0 0.0
    %441 = vmatpush.xpose.msra.mxu0 0.0
    %442 = vmatpush.xpose.msra.mxu0 0.0
    %443 = vmatpush.xpose.msra.mxu0 0.0
    %444 = vmatpush.xpose.msra.mxu0 0.0
    %445 = vmatpush.xpose.msra.mxu0 0.0
    %446 = vmatpush.xpose.msra.mxu0 0.0
    %447 = vmatpush.xpose.msra.mxu0 0.0
    %448 = vmatpush.xpose.msra.mxu0 0.0
    %449 = vmatpush.xpose.msra.mxu0 0.0
    %450 = vmatpush.xpose.msra.mxu0 0.0
    %451 = vmatpush.xpose.msra.mxu0 0.0
    %452 = vmatpush.xpose.msra.mxu0 %v435
    %453 = vmatmul.f32.gmra.mxu0 %v432
    %v454 = vpop.f32.mrf.mxu0
    %v455 = vadd.f32 0.0, %v454
    %456 = vdwg.mxu0
    %v458 = vsel %vm137, %v342, 0
    %v461 = vsel %vm137, %v267, 0
    %463 = vmatpush.xpose.msra.mxu0 0.0
    %464 = vmatpush.xpose.msra.mxu0 0.0
    %465 = vmatpush.xpose.msra.mxu0 0.0
    %466 = vmatpush.xpose.msra.mxu0 0.0
    %467 = vmatpush.xpose.msra.mxu0 0.0
    %468 = vmatpush.xpose.msra.mxu0 0.0
    %469 = vmatpush.xpose.msra.mxu0 0.0
    %470 = vmatpush.xpose.msra.mxu0 0.0
    %471 = vmatpush.xpose.msra.mxu0 0.0
    %472 = vmatpush.xpose.msra.mxu0 0.0
    %473 = vmatpush.xpose.msra.mxu0 0.0
    %474 = vmatpush.xpose.msra.mxu0 0.0
    %475 = vmatpush.xpose.msra.mxu0 0.0
    %476 = vmatpush.xpose.msra.mxu0 0.0
    %477 = vmatpush.xpose.msra.mxu0 0.0
    %478 = vmatpush.xpose.msra.mxu0 %v461
    %479 = vmatmul.f32.gmra.mxu0 %v458
    %v480 = vpop.f32.mrf.mxu0
    %v481 = vadd.f32 0.0, %v480
    %482 = vdwg.mxu0
    %v484 = vsel %vm137, %v345, 0
    %v487 = vsel %vm137, %v270, 0
    %489 = vmatpush.xpose.msra.mxu0 0.0
    %490 = vmatpush.xpose.msra.mxu0 0.0
    %491 = vmatpush.xpose.msra.mxu0 0.0
    %492 = vmatpush.xpose.msra.mxu0 0.0
    %493 = vmatpush.xpose.msra.mxu0 0.0
    %494 = vmatpush.xpose.msra.mxu0 0.0
    %495 = vmatpush.xpose.msra.mxu0 0.0
    %496 = vmatpush.xpose.msra.mxu0 0.0
    %497 = vmatpush.xpose.msra.mxu0 0.0
    %498 = vmatpush.xpose.msra.mxu0 0.0
    %499 = vmatpush.xpose.msra.mxu0 0.0
    %500 = vmatpush.xpose.msra.mxu0 0.0
    %501 = vmatpush.xpose.msra.mxu0 0.0
    %502 = vmatpush.xpose.msra.mxu0 0.0
    %503 = vmatpush.xpose.msra.mxu0 0.0
    %504 = vmatpush.xpose.msra.mxu0 %v487
    %505 = vmatmul.f32.gmra.mxu0 %v484
    %v506 = vpop.f32.mrf.mxu0
    %v507 = vadd.f32 0.0, %v506
    %508 = vdwg.mxu0
    %v510 = vsel %vm137, %v348, 0
    %v513 = vsel %vm137, %v273, 0
    %515 = vmatpush.xpose.msra.mxu0 0.0
    %516 = vmatpush.xpose.msra.mxu0 0.0
    %517 = vmatpush.xpose.msra.mxu0 0.0
    %518 = vmatpush.xpose.msra.mxu0 0.0
    %519 = vmatpush.xpose.msra.mxu0 0.0
    %520 = vmatpush.xpose.msra.mxu0 0.0
    %521 = vmatpush.xpose.msra.mxu0 0.0
    %522 = vmatpush.xpose.msra.mxu0 0.0
    %523 = vmatpush.xpose.msra.mxu0 0.0
    %524 = vmatpush.xpose.msra.mxu0 0.0
    %525 = vmatpush.xpose.msra.mxu0 0.0
    %526 = vmatpush.xpose.msra.mxu0 0.0
    %527 = vmatpush.xpose.msra.mxu0 0.0
    %528 = vmatpush.xpose.msra.mxu0 0.0
    %529 = vmatpush.xpose.msra.mxu0 0.0
    %530 = vmatpush.xpose.msra.mxu0 %v513
    %531 = vmatmul.f32.gmra.mxu0 %v510
    %v532 = vpop.f32.mrf.mxu0
    %v533 = vadd.f32 0.0, %v532
    %534 = vdwg.mxu0
    %v536 = vsel %vm137, %v351, 0
    %v539 = vsel %vm137, %v276, 0
    %541 = vmatpush.xpose.msra.mxu0 0.0
    %542 = vmatpush.xpose.msra.mxu0 0.0
    %543 = vmatpush.xpose.msra.mxu0 0.0
    %544 = vmatpush.xpose.msra.mxu0 0.0
    %545 = vmatpush.xpose.msra.mxu0 0.0
    %546 = vmatpush.xpose.msra.mxu0 0.0
    %547 = vmatpush.xpose.msra.mxu0 0.0
    %548 = vmatpush.xpose.msra.mxu0 0.0
    %549 = vmatpush.xpose.msra.mxu0 0.0
    %550 = vmatpush.xpose.msra.mxu0 0.0
    %551 = vmatpush.xpose.msra.mxu0 0.0
    %552 = vmatpush.xpose.msra.mxu0 0.0
    %553 = vmatpush.xpose.msra.mxu0 0.0
    %554 = vmatpush.xpose.msra.mxu0 0.0
    %555 = vmatpush.xpose.msra.mxu0 0.0
    %556 = vmatpush.xpose.msra.mxu0 %v539
    %557 = vmatmul.f32.gmra.mxu0 %v536
    %v558 = vpop.f32.mrf.mxu0
    %v559 = vadd.f32 0.0, %v558
    %560 = vdwg.mxu0
    %v561 = vmul.f32 %v377, 0.17677669
    %v562 = vmul.f32 %v403, 0.17677669
    %v563 = vmul.f32 %v429, 0.17677669
    %v564 = vmul.f32 %v455, 0.17677669
    %v565 = vmul.f32 %v481, 0.17677669
    %v566 = vmul.f32 %v507, 0.17677669
    %v567 = vmul.f32 %v533, 0.17677669
    %v568 = vmul.f32 %v559, 0.17677669
    %v569 = vld [vmem:[#allocation7] sm:$0xff]
    %v570 = vld [vmem:[#allocation7 + $0x8] sm:$0xff]
    %v571 = vld [vmem:[#allocation7 + $0x10] sm:$0xff]
    %v572 = vld [vmem:[#allocation7 + $0x18] sm:$0xff]
    %v573 = vld [vmem:[#allocation7 + $0x20] sm:$0xff]
    %v574 = vld [vmem:[#allocation7 + $0x28] sm:$0xff]
    %v575 = vld [vmem:[#allocation7 + $0x30] sm:$0xff]
    %v576 = vld [vmem:[#allocation7 + $0x38] sm:$0xff]
    %v577 = vadd.f32 %v561, %v569
    %v578 = vadd.f32 %v562, %v570
    %v579 = vadd.f32 %v563, %v571
    %v580 = vadd.f32 %v564, %v572
    %v581 = vadd.f32 %v565, %v573
    %v582 = vadd.f32 %v566, %v574
    %v583 = vadd.f32 %v567, %v575
    %v584 = vadd.f32 %v568, %v576
    %v585 = vsel %vm137, %v577, -inf
    %586 = vmax.xlane.f32.xlu0 %v585
    %v587 = vpop.xlane.xlu0 %586
    %v588 = vsel %vm137, %v578, -inf
    %589 = vmax.xlane.f32.xlu0 %v588
    %v590 = vpop.xlane.xlu0 %589
    %v591 = vsel %vm137, %v579, -inf
    %592 = vmax.xlane.f32.xlu0 %v591
    %v593 = vpop.xlane.xlu0 %592
    %v594 = vsel %vm137, %v580, -inf
    %595 = vmax.xlane.f32.xlu0 %v594
    %v596 = vpop.xlane.xlu0 %595
    %v597 = vsel %vm137, %v581, -inf
    %598 = vmax.xlane.f32.xlu0 %v597
    %v599 = vpop.xlane.xlu0 %598
    %v600 = vsel %vm137, %v582, -inf
    %601 = vmax.xlane.f32.xlu0 %v600
    %v602 = vpop.xlane.xlu0 %601
    %v603 = vsel %vm137, %v583, -inf
    %604 = vmax.xlane.f32.xlu0 %v603
    %v605 = vpop.xlane.xlu0 %604
    %v606 = vsel %vm137, %v584, -inf
    %607 = vmax.xlane.f32.xlu0 %v606
    %v608 = vpop.xlane.xlu0 %607
    %v609 = vsub.f32 %v577, %v587
    %v610 = vsub.f32 %v578, %v590
    %v611 = vsub.f32 %v579, %v593
    %v612 = vsub.f32 %v580, %v596
    %v613 = vsub.f32 %v581, %v599
    %v614 = vsub.f32 %v582, %v602
    %v615 = vsub.f32 %v583, %v605
    %v616 = vsub.f32 %v584, %v608
    %v617 = vmul.f32 %v609, 1.442695
    %v618 = vpow.pop %v617
    %v619 = vmul.f32 %v610, 1.442695
    %v620 = vpow.pop %v619
    %v621 = vmul.f32 %v611, 1.442695
    %v622 = vpow.pop %v621
    %v623 = vmul.f32 %v612, 1.442695
    %v624 = vpow.pop %v623
    %v625 = vmul.f32 %v613, 1.442695
    %v626 = vpow.pop %v625
    %v627 = vmul.f32 %v614, 1.442695
    %v628 = vpow.pop %v627
    %v629 = vmul.f32 %v615, 1.442695
    %v630 = vpow.pop %v629
    %v631 = vmul.f32 %v616, 1.442695
    %v632 = vpow.pop %v631
    %v633 = vsel %vm137, %v618, 0.0
    %634 = vadd.xlane.f32.xlu0 %v633
    %v635 = vpop.xlane.xlu0 %634
    %v636 = vsel %vm137, %v620, 0.0
    %637 = vadd.xlane.f32.xlu0 %v636
    %v638 = vpop.xlane.xlu0 %637
    %v639 = vsel %vm137, %v622, 0.0
    %640 = vadd.xlane.f32.xlu0 %v639
    %v641 = vpop.xlane.xlu0 %640
    %v642 = vsel %vm137, %v624, 0.0
    %643 = vadd.xlane.f32.xlu0 %v642
    %v644 = vpop.xlane.xlu0 %643
    %v645 = vsel %vm137, %v626, 0.0
    %646 = vadd.xlane.f32.xlu0 %v645
    %v647 = vpop.xlane.xlu0 %646
    %v648 = vsel %vm137, %v628, 0.0
    %649 = vadd.xlane.f32.xlu0 %v648
    %v650 = vpop.xlane.xlu0 %649
    %v651 = vsel %vm137, %v630, 0.0
    %652 = vadd.xlane.f32.xlu0 %v651
    %v653 = vpop.xlane.xlu0 %652
    %v654 = vsel %vm137, %v632, 0.0
    %655 = vadd.xlane.f32.xlu0 %v654
    %v656 = vpop.xlane.xlu0 %655
    %v657 = vrcp.pop %v635
    %v658 = vrcp.pop %v638
    %v659 = vrcp.pop %v641
    %v660 = vrcp.pop %v644
    %v661 = vrcp.pop %v647
    %v662 = vrcp.pop %v650
    %v663 = vrcp.pop %v653
    %v664 = vrcp.pop %v656
    %v665 = vmul.f32 %v618, %v657
    %v666 = vmul.f32 %v620, %v658
    %v667 = vmul.f32 %v622, %v659
    %v668 = vmul.f32 %v624, %v660
    %v669 = vmul.f32 %v626, %v661
    %v670 = vmul.f32 %v628, %v662
    %v671 = vmul.f32 %v630, %v663
    %v672 = vmul.f32 %v632, %v664
    %v674 = vsel %vm137, %v665, 0
    %676 = vmatpush.msra.mxu0 0.0
    %677 = vmatpush.msra.mxu0 0.0
    %678 = vmatpush.msra.mxu0 0.0
    %679 = vmatpush.msra.mxu0 0.0
    %680 = vmatpush.msra.mxu0 0.0
    %681 = vmatpush.msra.mxu0 0.0
    %682 = vmatpush.msra.mxu0 0.0
    %683 = vmatpush.msra.mxu0 0.0
    %684 = vmatpush.msra.mxu0 0.0
    %685 = vmatpush.msra.mxu0 0.0
    %686 = vmatpush.msra.mxu0 0.0
    %687 = vmatpush.msra.mxu0 0.0
    %688 = vmatpush.msra.mxu0 0.0
    %689 = vmatpush.msra.mxu0 0.0
    %690 = vmatpush.msra.mxu0 0.0
    %691 = vmatpush.msra.mxu0 %v180
    %692 = vmatmul.f32.gmra.mxu0 %v674
    %v693 = vpop.f32.mrf.mxu0
    %v694 = vadd.f32 0.0, %v693
    %695 = vdwg.mxu0
    %v697 = vsel %vm137, %v666, 0
    %699 = vmatpush.msra.mxu0 0.0
    %700 = vmatpush.msra.mxu0 0.0
    %701 = vmatpush.msra.mxu0 0.0
    %702 = vmatpush.msra.mxu0 0.0
    %703 = vmatpush.msra.mxu0 0.0
    %704 = vmatpush.msra.mxu0 0.0
    %705 = vmatpush.msra.mxu0 0.0
    %706 = vmatpush.msra.mxu0 0.0
    %707 = vmatpush.msra.mxu0 0.0
    %708 = vmatpush.msra.mxu0 0.0
    %709 = vmatpush.msra.mxu0 0.0
    %710 = vmatpush.msra.mxu0 0.0
    %711 = vmatpush.msra.mxu0 0.0
    %712 = vmatpush.msra.mxu0 0.0
    %713 = vmatpush.msra.mxu0 0.0
    %714 = vmatpush.msra.mxu0 %v183
    %715 = vmatmul.f32.gmra.mxu0 %v697
    %v716 = vpop.f32.mrf.mxu0
    %v717 = vadd.f32 0.0, %v716
    %718 = vdwg.mxu0
    %v720 = vsel %vm137, %v667, 0
    %722 = vmatpush.msra.mxu0 0.0
    %723 = vmatpush.msra.mxu0 0.0
    %724 = vmatpush.msra.mxu0 0.0
    %725 = vmatpush.msra.mxu0 0.0
    %726 = vmatpush.msra.mxu0 0.0
    %727 = vmatpush.msra.mxu0 0.0
    %728 = vmatpush.msra.mxu0 0.0
    %729 = vmatpush.msra.mxu0 0.0
    %730 = vmatpush.msra.mxu0 0.0
    %731 = vmatpush.msra.mxu0 0.0
    %732 = vmatpush.msra.mxu0 0.0
    %733 = vmatpush.msra.mxu0 0.0
    %734 = vmatpush.msra.mxu0 0.0
    %735 = vmatpush.msra.mxu0 0.0
    %736 = vmatpush.msra.mxu0 0.0
    %737 = vmatpush.msra.mxu0 %v186
    %738 = vmatmul.f32.gmra.mxu0 %v720
    %v739 = vpop.f32.mrf.mxu0
    %v740 = vadd.f32 0.0, %v739
    %741 = vdwg.mxu0
    %v743 = vsel %vm137, %v668, 0
    %745 = vmatpush.msra.mxu0 0.0
    %746 = vmatpush.msra.mxu0 0.0
    %747 = vmatpush.msra.mxu0 0.0
    %748 = vmatpush.msra.mxu0 0.0
    %749 = vmatpush.msra.mxu0 0.0
    %750 = vmatpush.msra.mxu0 0.0
    %751 = vmatpush.msra.mxu0 0.0
    %752 = vmatpush.msra.mxu0 0.0
    %753 = vmatpush.msra.mxu0 0.0
    %754 = vmatpush.msra.mxu0 0.0
    %755 = vmatpush.msra.mxu0 0.0
    %756 = vmatpush.msra.mxu0 0.0
    %757 = vmatpush.msra.mxu0 0.0
    %758 = vmatpush.msra.mxu0 0.0
    %759 = vmatpush.msra.mxu0 0.0
    %760 = vmatpush.msra.mxu0 %v189
    %761 = vmatmul.f32.gmra.mxu0 %v743
    %v762 = vpop.f32.mrf.mxu0
    %v763 = vadd.f32 0.0, %v762
    %764 = vdwg.mxu0
    %v766 = vsel %vm137, %v669, 0
    %768 = vmatpush.msra.mxu0 0.0
    %769 = vmatpush.msra.mxu0 0.0
    %770 = vmatpush.msra.mxu0 0.0
    %771 = vmatpush.msra.mxu0 0.0
    %772 = vmatpush.msra.mxu0 0.0
    %773 = vmatpush.msra.mxu0 0.0
    %774 = vmatpush.msra.mxu0 0.0
    %775 = vmatpush.msra.mxu0 0.0
    %776 = vmatpush.msra.mxu0 0.0
    %777 = vmatpush.msra.mxu0 0.0
    %778 = vmatpush.msra.mxu0 0.0
    %779 = vmatpush.msra.mxu0 0.0
    %780 = vmatpush.msra.mxu0 0.0
    %781 = vmatpush.msra.mxu0 0.0
    %782 = vmatpush.msra.mxu0 0.0
    %783 = vmatpush.msra.mxu0 %v192
    %784 = vmatmul.f32.gmra.mxu0 %v766
    %v785 = vpop.f32.mrf.mxu0
    %v786 = vadd.f32 0.0, %v785
    %787 = vdwg.mxu0
    %v789 = vsel %vm137, %v670, 0
    %791 = vmatpush.msra.mxu0 0.0
    %792 = vmatpush.msra.mxu0 0.0
    %793 = vmatpush.msra.mxu0 0.0
    %794 = vmatpush.msra.mxu0 0.0
    %795 = vmatpush.msra.mxu0 0.0
    %796 = vmatpush.msra.mxu0 0.0
    %797 = vmatpush.msra.mxu0 0.0
    %798 = vmatpush.msra.mxu0 0.0
    %799 = vmatpush.msra.mxu0 0.0
    %800 = vmatpush.msra.mxu0 0.0
    %801 = vmatpush.msra.mxu0 0.0
    %802 = vmatpush.msra.mxu0 0.0
    %803 = vmatpush.msra.mxu0 0.0
    %804 = vmatpush.msra.mxu0 0.0
    %805 = vmatpush.msra.mxu0 0.0
    %806 = vmatpush.msra.mxu0 %v195
    %807 = vmatmul.f32.gmra.mxu0 %v789
    %v808 = vpop.f32.mrf.mxu0
    %v809 = vadd.f32 0.0, %v808
    %810 = vdwg.mxu0
    %v812 = vsel %vm137, %v671, 0
    %814 = vmatpush.msra.mxu0 0.0
    %815 = vmatpush.msra.mxu0 0.0
    %816 = vmatpush.msra.mxu0 0.0
    %817 = vmatpush.msra.mxu0 0.0
    %818 = vmatpush.msra.mxu0 0.0
    %819 = vmatpush.msra.mxu0 0.0
    %820 = vmatpush.msra.mxu0 0.0
    %821 = vmatpush.msra.mxu0 0.0
    %822 = vmatpush.msra.mxu0 0.0
    %823 = vmatpush.msra.mxu0 0.0
    %824 = vmatpush.msra.mxu0 0.0
    %825 = vmatpush.msra.mxu0 0.0
    %826 = vmatpush.msra.mxu0 0.0
    %827 = vmatpush.msra.mxu0 0.0
    %828 = vmatpush.msra.mxu0 0.0
    %829 = vmatpush.msra.mxu0 %v198
    %830 = vmatmul.f32.gmra.mxu0 %v812
    %v831 = vpop.f32.mrf.mxu0
    %v832 = vadd.f32 0.0, %v831
    %833 = vdwg.mxu0
    %v835 = vsel %vm137, %v672, 0
    %837 = vmatpush.msra.mxu0 0.0
    %838 = vmatpush.msra.mxu0 0.0
    %839 = vmatpush.msra.mxu0 0.0
    %840 = vmatpush.msra.mxu0 0.0
    %841 = vmatpush.msra.mxu0 0.0
    %842 = vmatpush.msra.mxu0 0.0
    %843 = vmatpush.msra.mxu0 0.0
    %844 = vmatpush.msra.mxu0 0.0
    %845 = vmatpush.msra.mxu0 0.0
    %846 = vmatpush.msra.mxu0 0.0
    %847 = vmatpush.msra.mxu0 0.0
    %848 = vmatpush.msra.mxu0 0.0
    %849 = vmatpush.msra.mxu0 0.0
    %850 = vmatpush.msra.mxu0 0.0
    %851 = vmatpush.msra.mxu0 0.0
    %852 = vmatpush.msra.mxu0 %v201
    %853 = vmatmul.f32.gmra.mxu0 %v835
    %v854 = vpop.f32.mrf.mxu0
    %v855 = vadd.f32 0.0, %v854
    %856 = vdwg.mxu0
    %v857 = vld [vmem:[#allocation10] sm:$0xff]
    %v858 = vld [vmem:[#allocation10 + $0x8] sm:$0xff]
    %v859 = vld [vmem:[#allocation10 + $0x10] sm:$0xff]
    %v860 = vld [vmem:[#allocation10 + $0x18] sm:$0xff]
    %v861 = vld [vmem:[#allocation10 + $0x20] sm:$0xff]
    %v862 = vld [vmem:[#allocation10 + $0x28] sm:$0xff]
    %v863 = vld [vmem:[#allocation10 + $0x30] sm:$0xff]
    %v864 = vld [vmem:[#allocation10 + $0x38] sm:$0xff]
    %v866 = vsel %vm137, %v694, 0
    %868 = vmatpush.msra.mxu0 0.0
    %869 = vmatpush.msra.mxu0 0.0
    %870 = vmatpush.msra.mxu0 0.0
    %871 = vmatpush.msra.mxu0 0.0
    %872 = vmatpush.msra.mxu0 0.0
    %873 = vmatpush.msra.mxu0 0.0
    %874 = vmatpush.msra.mxu0 0.0
    %875 = vmatpush.msra.mxu0 0.0
    %876 = vmatpush.msra.mxu0 0.0
    %877 = vmatpush.msra.mxu0 0.0
    %878 = vmatpush.msra.mxu0 0.0
    %879 = vmatpush.msra.mxu0 0.0
    %880 = vmatpush.msra.mxu0 0.0
    %881 = vmatpush.msra.mxu0 0.0
    %882 = vmatpush.msra.mxu0 0.0
    %883 = vmatpush.msra.mxu0 %v857
    %884 = vmatmul.f32.gmra.mxu0 %v866
    %v885 = vpop.f32.mrf.mxu0
    %v886 = vadd.f32 0.0, %v885
    %887 = vdwg.mxu0
    %v889 = vsel %vm137, %v717, 0
    %891 = vmatpush.msra.mxu0 0.0
    %892 = vmatpush.msra.mxu0 0.0
    %893 = vmatpush.msra.mxu0 0.0
    %894 = vmatpush.msra.mxu0 0.0
    %895 = vmatpush.msra.mxu0 0.0
    %896 = vmatpush.msra.mxu0 0.0
    %897 = vmatpush.msra.mxu0 0.0
    %898 = vmatpush.msra.mxu0 0.0
    %899 = vmatpush.msra.mxu0 0.0
    %900 = vmatpush.msra.mxu0 0.0
    %901 = vmatpush.msra.mxu0 0.0
    %902 = vmatpush.msra.mxu0 0.0
    %903 = vmatpush.msra.mxu0 0.0
    %904 = vmatpush.msra.mxu0 0.0
    %905 = vmatpush.msra.mxu0 0.0
    %906 = vmatpush.msra.mxu0 %v858
    %907 = vmatmul.f32.gmra.mxu0 %v889
    %v908 = vpop.f32.mrf.mxu0
    %v909 = vadd.f32 0.0, %v908
    %910 = vdwg.mxu0
    %v912 = vsel %vm137, %v740, 0
    %914 = vmatpush.msra.mxu0 0.0
    %915 = vmatpush.msra.mxu0 0.0
    %916 = vmatpush.msra.mxu0 0.0
    %917 = vmatpush.msra.mxu0 0.0
    %918 = vmatpush.msra.mxu0 0.0
    %919 = vmatpush.msra.mxu0 0.0
    %920 = vmatpush.msra.mxu0 0.0
    %921 = vmatpush.msra.mxu0 0.0
    %922 = vmatpush.msra.mxu0 0.0
    %923 = vmatpush.msra.mxu0 0.0
    %924 = vmatpush.msra.mxu0 0.0
    %925 = vmatpush.msra.mxu0 0.0
    %926 = vmatpush.msra.mxu0 0.0
    %927 = vmatpush.msra.mxu0 0.0
    %928 = vmatpush.msra.mxu0 0.0
    %929 = vmatpush.msra.mxu0 %v859
    %930 = vmatmul.f32.gmra.mxu0 %v912
    %v931 = vpop.f32.mrf.mxu0
    %v932 = vadd.f32 0.0, %v931
    %933 = vdwg.mxu0
    %v935 = vsel %vm137, %v763, 0
    %937 = vmatpush.msra.mxu0 0.0
    %938 = vmatpush.msra.mxu0 0.0
    %939 = vmatpush.msra.mxu0 0.0
    %940 = vmatpush.msra.mxu0 0.0
    %941 = vmatpush.msra.mxu0 0.0
    %942 = vmatpush.msra.mxu0 0.0
    %943 = vmatpush.msra.mxu0 0.0
    %944 = vmatpush.msra.mxu0 0.0
    %945 = vmatpush.msra.mxu0 0.0
    %946 = vmatpush.msra.mxu0 0.0
    %947 = vmatpush.msra.mxu0 0.0
    %948 = vmatpush.msra.mxu0 0.0
    %949 = vmatpush.msra.mxu0 0.0
    %950 = vmatpush.msra.mxu0 0.0
    %951 = vmatpush.msra.mxu0 0.0
    %952 = vmatpush.msra.mxu0 %v860
    %953 = vmatmul.f32.gmra.mxu0 %v935
    %v954 = vpop.f32.mrf.mxu0
    %v955 = vadd.f32 0.0, %v954
    %956 = vdwg.mxu0
    %v958 = vsel %vm137, %v786, 0
    %960 = vmatpush.msra.mxu0 0.0
    %961 = vmatpush.msra.mxu0 0.0
    %962 = vmatpush.msra.mxu0 0.0
    %963 = vmatpush.msra.mxu0 0.0
    %964 = vmatpush.msra.mxu0 0.0
    %965 = vmatpush.msra.mxu0 0.0
    %966 = vmatpush.msra.mxu0 0.0
    %967 = vmatpush.msra.mxu0 0.0
    %968 = vmatpush.msra.mxu0 0.0
    %969 = vmatpush.msra.mxu0 0.0
    %970 = vmatpush.msra.mxu0 0.0
    %971 = vmatpush.msra.mxu0 0.0
    %972 = vmatpush.msra.mxu0 0.0
    %973 = vmatpush.msra.mxu0 0.0
    %974 = vmatpush.msra.mxu0 0.0
    %975 = vmatpush.msra.mxu0 %v861
    %976 = vmatmul.f32.gmra.mxu0 %v958
    %v977 = vpop.f32.mrf.mxu0
    %v978 = vadd.f32 0.0, %v977
    %979 = vdwg.mxu0
    %v981 = vsel %vm137, %v809, 0
    %983 = vmatpush.msra.mxu0 0.0
    %984 = vmatpush.msra.mxu0 0.0
    %985 = vmatpush.msra.mxu0 0.0
    %986 = vmatpush.msra.mxu0 0.0
    %987 = vmatpush.msra.mxu0 0.0
    %988 = vmatpush.msra.mxu0 0.0
    %989 = vmatpush.msra.mxu0 0.0
    %990 = vmatpush.msra.mxu0 0.0
    %991 = vmatpush.msra.mxu0 0.0
    %992 = vmatpush.msra.mxu0 0.0
    %993 = vmatpush.msra.mxu0 0.0
    %994 = vmatpush.msra.mxu0 0.0
    %995 = vmatpush.msra.mxu0 0.0
    %996 = vmatpush.msra.mxu0 0.0
    %997 = vmatpush.msra.mxu0 0.0
    %998 = vmatpush.msra.mxu0 %v862
    %999 = vmatmul.f32.gmra.mxu0 %v981
    %v1000 = vpop.f32.mrf.mxu0
    %v1001 = vadd.f32 0.0, %v1000
    %1002 = vdwg.mxu0
    %v1004 = vsel %vm137, %v832, 0
    %1006 = vmatpush.msra.mxu0 0.0
    %1007 = vmatpush.msra.mxu0 0.0
    %1008 = vmatpush.msra.mxu0 0.0
    %1009 = vmatpush.msra.mxu0 0.0
    %1010 = vmatpush.msra.mxu0 0.0
    %1011 = vmatpush.msra.mxu0 0.0
    %1012 = vmatpush.msra.mxu0 0.0
    %1013 = vmatpush.msra.mxu0 0.0
    %1014 = vmatpush.msra.mxu0 0.0
    %1015 = vmatpush.msra.mxu0 0.0
    %1016 = vmatpush.msra.mxu0 0.0
    %1017 = vmatpush.msra.mxu0 0.0
    %1018 = vmatpush.msra.mxu0 0.0
    %1019 = vmatpush.msra.mxu0 0.0
    %1020 = vmatpush.msra.mxu0 0.0
    %1021 = vmatpush.msra.mxu0 %v863
    %1022 = vmatmul.f32.gmra.mxu0 %v1004
    %v1023 = vpop.f32.mrf.mxu0
    %v1024 = vadd.f32 0.0, %v1023
    %1025 = vdwg.mxu0
    %v1027 = vsel %vm137, %v855, 0
    %1029 = vmatpush.msra.mxu0 0.0
    %1030 = vmatpush.msra.mxu0 0.0
    %1031 = vmatpush.msra.mxu0 0.0
    %1032 = vmatpush.msra.mxu0 0.0
    %1033 = vmatpush.msra.mxu0 0.0
    %1034 = vmatpush.msra.mxu0 0.0
    %1035 = vmatpush.msra.mxu0 0.0
    %1036 = vmatpush.msra.mxu0 0.0
    %1037 = vmatpush.msra.mxu0 0.0
    %1038 = vmatpush.msra.mxu0 0.0
    %1039 = vmatpush.msra.mxu0 0.0
    %1040 = vmatpush.msra.mxu0 0.0
    %1041 = vmatpush.msra.mxu0 0.0
    %1042 = vmatpush.msra.mxu0 0.0
    %1043 = vmatpush.msra.mxu0 0.0
    %1044 = vmatpush.msra.mxu0 %v864
    %1045 = vmatmul.f32.gmra.mxu0 %v1027
    %v1046 = vpop.f32.mrf.mxu0
    %v1047 = vadd.f32 0.0, %v1046
    %1048 = vdwg.mxu0
    %v1049 = vadd.f32 %v886, %v909
    %v1050 = vadd.f32 %v978, %v1001
    %v1051 = vadd.f32 %v1049, %v932
    %v1052 = vadd.f32 %v1050, %v1024
    %v1053 = vadd.f32 %v1051, %v955
    %v1054 = vadd.f32 %v1052, %v1047
    %v1055 = vld [vmem:[#allocation11] sm:$0x1]
    %v1056 = vld [vmem:[#allocation11 + $0x1] sm:$0x1]
    %v1057 = vld [vmem:[#allocation11 + $0x2] sm:$0x1]
    %v1058 = vld [vmem:[#allocation11 + $0x3] sm:$0x1]
    %v1059 = vld [vmem:[#allocation11 + $0x4] sm:$0x1]
    %v1060 = vld [vmem:[#allocation11 + $0x5] sm:$0x1]
    %v1061 = vld [vmem:[#allocation11 + $0x6] sm:$0x1]
    %v1062 = vperm.slane %v1055, 0
    %v1063 = vadd.f32 %v1053, %v1062
    %v1064 = vadd.f32 %v1054, %v1062
    %v1065 = vld [vmem:[#allocation5] sm:$0xff]
    %v1066 = vld [vmem:[#allocation5 + $0x8] sm:$0xff]
    %v1067 = vadd.f32 %v1063, %v1065
    %v1068 = vadd.f32 %v1064, %v1066
    %vm1069 = vcmask 261120
    %v1070 = vsel %vm1069, %v1067, 0.0
    %1071 = vadd.xlane.f32.xlu0 %v1070
    %v1072 = vpop.xlane.xlu0 %1071
    %v1073 = vsel %vm1069, %v1068, 0.0
    %1074 = vadd.xlane.f32.xlu0 %v1073
    %v1075 = vpop.xlane.xlu0 %1074
    %v1076 = vrcp.pop 32.0
    %v1077 = vmul.f32 32.0, %v1076
    %v1078 = vsub.f32 1.0, %v1077
    %v1079 = vmul.f32 %v1076, %v1078
    %v1080 = vadd.f32 %v1076, %v1079
    %vm1081 = vweird.f32 %v1076
    %v1082 = vsel %vm1081, %v1076, %v1080
    %v1083 = vmul.f32 %v1072, %v1082
    %v1084 = vmul.f32 %v1075, %v1082
    %v1085 = vsub.f32 %v1067, %v1083
    %v1086 = vsub.f32 %v1068, %v1084
    %v1087 = vmul.f32 %v1085, %v1085
    %v1088 = vmul.f32 %v1086, %v1086
    %v1089 = vsel %vm1069, %v1087, 0.0
    %1090 = vadd.xlane.f32.xlu0 %v1089
    %v1091 = vpop.xlane.xlu0 %1090
    %v1092 = vsel %vm1069, %v1088, 0.0
    %1093 = vadd.xlane.f32.xlu0 %v1092
    %v1094 = vpop.xlane.xlu0 %1093
    %v1095 = vmul.f32 %v1091, %v1082
    %v1096 = vmul.f32 %v1094, %v1082
    %v1097 = vadd.f32 %v1095, 1e-05
    %v1098 = vadd.f32 %v1096, 1e-05
    %v1099 = vrsqrt.pop %v1097
    %v1100 = vmul.f32 %v1099, %v1097
    %v1101 = vmul.f32 %v1100, %v1099
    %v1102 = vmul.f32 0.5, %v1101
    %v1103 = vsub.f32 1.5, %v1102
    %v1104 = vmul.f32 %v1099, %v1103
    %vm1105 = vweird.f32 %v1097
    %vm1106 = vweird.f32 %v1099
    %vm1107 = vmor %vm1105, %vm1106
    %v1108 = vsel %vm1107, %v1099, %v1104
    %v1109 = vrsqrt.pop %v1098
    %v1110 = vmul.f32 %v1109, %v1098
    %v1111 = vmul.f32 %v1110, %v1109
    %v1112 = vmul.f32 0.5, %v1111
    %v1113 = vsub.f32 1.5, %v1112
    %v1114 = vmul.f32 %v1109, %v1113
    %vm1115 = vweird.f32 %v1098
    %vm1116 = vweird.f32 %v1109
    %vm1117 = vmor %vm1115, %vm1116
    %v1118 = vsel %vm1117, %v1109, %v1114
    %v1119 = vmul.f32 %v1085, %v1108
    %v1120 = vmul.f32 %v1086, %v1118
    %v1121 = vperm.slane %v1056, 0
    %v1122 = vmul.f32 %v1119, %v1121
    %v1123 = vmul.f32 %v1120, %v1121
    %v1124 = vperm.slane %v1057, 0
    %v1125 = vadd.f32 %v1122, %v1124
    %v1126 = vadd.f32 %v1123, %v1124
    %v1127 = vld [vmem:[%s7] sm:$0xff]
    %v1128 = vld [vmem:[%s7 + $0x8] sm:$0xff]
    %v1129 = vld [vmem:[%s7 + $0x10] sm:$0xff]
    %v1130 = vld [vmem:[%s7 + $0x18] sm:$0xff]
    %v1131 = vperm.slane %v1058, 0
    %v1133 = vsel %vm1069, %v1125, 0
    %v1136 = vsel %vm1069, %v1126, 0
    %1138 = vmatpush.msra.mxu0 0.0
    %1139 = vmatpush.msra.mxu0 0.0
    %1140 = vmatpush.msra.mxu0 0.0
    %1141 = vmatpush.msra.mxu0 0.0
    %1142 = vmatpush.msra.mxu0 0.0
    %1143 = vmatpush.msra.mxu0 0.0
    %1144 = vmatpush.msra.mxu0 0.0
    %1145 = vmatpush.msra.mxu0 0.0
    %1146 = vmatpush.msra.mxu0 0.0
    %1147 = vmatpush.msra.mxu0 0.0
    %1148 = vmatpush.msra.mxu0 0.0
    %1149 = vmatpush.msra.mxu0 0.0
    %1150 = vmatpush.msra.mxu0 %v1130
    %1151 = vmatpush.msra.mxu0 %v1129
    %1152 = vmatpush.msra.mxu0 %v1128
    %1153 = vmatpush.msra.mxu0 %v1127
    %1154 = vmatmul.f32.gmra.mxu0 %v1133
    %v1155 = vpop.f32.mrf.mxu0
    %v1156 = vadd.f32 %v1131, %v1155
    %1157 = vmatmul.f32.gmra.mxu0 %v1136
    %v1158 = vpop.f32.mrf.mxu0
    %v1159 = vadd.f32 %v1131, %v1158
    %1160 = vdwg.mxu0
    %v1161 = vmax.f32 %v1156, 0.0
    %v1162 = vmax.f32 %v1159, 0.0
    %v1163 = vld [vmem:[%s8] sm:$0xff]
    %v1164 = vld [vmem:[%s8 + $0x8] sm:$0xff]
    %v1165 = vld [vmem:[%s8 + $0x10] sm:$0xff]
    %v1166 = vld [vmem:[%s8 + $0x18] sm:$0xff]
    %v1167 = vld [vmem:[%s8 + $0x20] sm:$0xff]
    %v1168 = vld [vmem:[%s8 + $0x28] sm:$0xff]
    %v1169 = vld [vmem:[%s8 + $0x30] sm:$0xff]
    %v1170 = vld [vmem:[%s8 + $0x38] sm:$0xff]
    %v1171 = vld [vmem:[%s8 + $0x40] sm:$0xff]
    %v1172 = vld [vmem:[%s8 + $0x48] sm:$0xff]
    %v1173 = vld [vmem:[%s8 + $0x50] sm:$0xff]
    %v1174 = vld [vmem:[%s8 + $0x58] sm:$0xff]
    %v1175 = vld [vmem:[%s8 + $0x60] sm:$0xff]
    %v1176 = vld [vmem:[%s8 + $0x68] sm:$0xff]
    %v1177 = vld [vmem:[%s8 + $0x70] sm:$0xff]
    %v1178 = vld [vmem:[%s8 + $0x78] sm:$0xff]
    %v1179 = vperm.slane %v1059, 0
    %1180 = vmatpush.msra.mxu0 %v1178
    %1181 = vmatpush.msra.mxu0 %v1177
    %1182 = vmatpush.msra.mxu0 %v1176
    %1183 = vmatpush.msra.mxu0 %v1175
    %1184 = vmatpush.msra.mxu0 %v1174
    %1185 = vmatpush.msra.mxu0 %v1173
    %1186 = vmatpush.msra.mxu0 %v1172
    %1187 = vmatpush.msra.mxu0 %v1171
    %1188 = vmatpush.msra.mxu0 %v1170
    %1189 = vmatpush.msra.mxu0 %v1169
    %1190 = vmatpush.msra.mxu0 %v1168
    %1191 = vmatpush.msra.mxu0 %v1167
    %1192 = vmatpush.msra.mxu0 %v1166
    %1193 = vmatpush.msra.mxu0 %v1165
    %1194 = vmatpush.msra.mxu0 %v1164
    %1195 = vmatpush.msra.mxu0 %v1163
    %1196 = vmatmul.f32.gmra.mxu0 %v1161
    %v1197 = vpop.f32.mrf.mxu0
    %v1198 = vadd.f32 %v1179, %v1197
    %1199 = vmatmul.f32.gmra.mxu0 %v1162
    %v1200 = vpop.f32.mrf.mxu0
    %v1201 = vadd.f32 %v1179, %v1200
    %1202 = vdwg.mxu0
    %v1203 = vadd.f32 %v1198, %v1125
    %v1204 = vadd.f32 %v1201, %v1126
    %v1205 = vsel %vm1069, %v1203, 0.0
    %1206 = vadd.xlane.f32.xlu0 %v1205
    %v1207 = vpop.xlane.xlu0 %1206
    %v1208 = vsel %vm1069, %v1204, 0.0
    %1209 = vadd.xlane.f32.xlu0 %v1208
    %v1210 = vpop.xlane.xlu0 %1209
    %v1211 = vmul.f32 %v1207, %v1082
    %v1212 = vmul.f32 %v1210, %v1082
    %v1213 = vsub.f32 %v1203, %v1211
    %v1214 = vsub.f32 %v1204, %v1212
    %v1215 = vmul.f32 %v1213, %v1213
    %v1216 = vmul.f32 %v1214, %v1214
    %v1217 = vsel %vm1069, %v1215, 0.0
    %1218 = vadd.xlane.f32.xlu0 %v1217
    %v1219 = vpop.xlane.xlu0 %1218
    %v1220 = vsel %vm1069, %v1216, 0.0
    %1221 = vadd.xlane.f32.xlu0 %v1220
    %v1222 = vpop.xlane.xlu0 %1221
    %v1223 = vmul.f32 %v1219, %v1082
    %v1224 = vmul.f32 %v1222, %v1082
    %v1225 = vadd.f32 %v1223, 1e-05
    %v1226 = vadd.f32 %v1224, 1e-05
    %v1227 = vrsqrt.pop %v1225
    %v1228 = vmul.f32 %v1227, %v1225
    %v1229 = vmul.f32 %v1228, %v1227
    %v1230 = vmul.f32 0.5, %v1229
    %v1231 = vsub.f32 1.5, %v1230
    %v1232 = vmul.f32 %v1227, %v1231
    %vm1233 = vweird.f32 %v1225
    %vm1234 = vweird.f32 %v1227
    %vm1235 = vmor %vm1233, %vm1234
    %v1236 = vsel %vm1235, %v1227, %v1232
    %v1237 = vrsqrt.pop %v1226
    %v1238 = vmul.f32 %v1237, %v1226
    %v1239 = vmul.f32 %v1238, %v1237
    %v1240 = vmul.f32 0.5, %v1239
    %v1241 = vsub.f32 1.5, %v1240
    %v1242 = vmul.f32 %v1237, %v1241
    %vm1243 = vweird.f32 %v1226
    %vm1244 = vweird.f32 %v1237
    %vm1245 = vmor %vm1243, %vm1244
    %v1246 = vsel %vm1245, %v1237, %v1242
    %v1247 = vmul.f32 %v1213, %v1236
    %v1248 = vmul.f32 %v1214, %v1246
    %v1249 = vperm.slane %v1060, 0
    %v1250 = vmul.f32 %v1247, %v1249
    %v1251 = vmul.f32 %v1248, %v1249
    %v1252 = vperm.slane %v1061, 0
    %v1253 = vadd.f32 %v1250, %v1252
    %v1254 = vadd.f32 %v1251, %v1252
    %1255 = vst.msk [vmem:[#allocation13] sm:$0xff] %vm1069, %v1253
    %1256 = vst.msk [vmem:[#allocation13 + $0x8] sm:$0xff] %vm1069, %v1254
    // Predicated region
    $region66: #{tpu_custom_call.1} parent=1 // pred_check
      _
    $region67: #{tpu_custom_call.1} parent=1 // pred_check_branch
      %1258 = sbr.rel (0) target = $region69
    $region68: #{tpu_custom_call.1} parent=1 // pred_region
      %1260 = vsyncadd [#allocation4], 0
      %s1261 = sshll.u32 [#allocation13], 4
      %s1262 = int_to_ptr.vmem [resolvable:$true] %s1261
      %s1263 = sshll.u32 %s10, 4
      %s1264 = int_to_ptr.hbm [resolvable:$true] %s1263
      %1269 = dma.vmem_to_hbm [thread:$0]  %s1262, 256, %s1264, [#allocation4], 128, 128, 8
    $region69: #{tpu_custom_call.1} parent=1 // pred_fallthru
      _
    // Predicated region
    $region70: #{tpu_custom_call.1} parent=1 // pred_check
      _
    $region71: #{tpu_custom_call.1} parent=1 // pred_check_branch
      %1271 = sbr.rel (0) target = $region73
    $region72: #{tpu_custom_call.1} parent=1 // pred_region
      %1273 = dma.done [#allocation4], 256
    $region73: #{tpu_custom_call.1} parent=1 // pred_fallthru
      _
    %1274 = vsyncpa [#allocation3], 1
    %1275 = vsyncpa [#allocation6], 1
    %1276 = vsyncpa [#allocation9], 1
    %1277 = vsyncpa [#allocation12], 1
    %1278 = vsyncpa [#allocation4], 1

</llo_original>
